<compile_context>
chip_gen: v5e
topology: v5e:2x2
jax: 0.10.0
libtpu: 0.0.40
codegen_flags: <defaults>
</compile_context>

<pallas_src>
import functools

import numpy as np
import jax
import jax.numpy as jnp
from jax import lax
from jax.experimental import pallas as pl
from jax.experimental.pallas import tpu as pltpu


def _round_up(v, m):
    return ((v + m - 1) // m) * m


_TILE_ROWS_TARGET = 256            # packed frame rows per grid step
_VMEM_WORKSET_BUDGET = 24 << 20    # per-step working-set target (v7x: 64 MiB)
_BIG_BASIS_BYTES = 4 << 20         # above this, single-buffer the basis block


# ---------------------------------------------------------------------------
# Pallas kernel: one (signal row, frame-row tile) per grid step.
# ---------------------------------------------------------------------------
def _stft_l1_kernel(fx_ref, fy_ref, basis_ref, mag_ref, log_ref, *,
                    flanes, clamp_eps, pw):
    """L1 partial sums of |STFT(x)|-|STFT(y)| and log-magnitude differences.

    fx_ref / fy_ref : (1, tile_rows, K)  packed frames (K = p * n_fft)
    basis_ref       : (K, 2*flanes)      windowed DFT basis, [re | im] stacked
    mag_ref/log_ref : (1, 1, 8, flanes)  per-step partial-sum blocks
    """
    f = flanes
    b = basis_ref[...]

    # One full-depth MXU matmul per signal gives re and im for every packed
    # frame slot at once (lanes [0, f) = re, [f, 2f) = im).
    zx = jnp.dot(fx_ref[0], b, preferred_element_type=jnp.float32,
                 precision=lax.Precision.HIGHEST)
    zy = jnp.dot(fy_ref[0], b, preferred_element_type=jnp.float32,
                 precision=lax.Precision.HIGHEST)

    # |X|^2 = re^2 + im^2 via a vreg-aligned static lane slice (f % 128 == 0);
    # everything downstream runs on exactly f lanes (no lane duplication).
    zx2 = zx * zx
    zy2 = zy * zy
    px = zx2[:, :f] + zx2[:, f:]
    py = zy2[:, :f] + zy2[:, f:]

    mx = jnp.sqrt(px)                     # |STFT(x)|
    my = jnp.sqrt(py)                     # |STFT(y)|

    # Raw-magnitude L1 term.
    mag_d = jnp.abs(mx - my)

    # |log10(clamp(mx)^pw) - log10(clamp(my)^pw)| == pw*|log10(cx)-log10(cy)|.
    # Two log10s cost the same EUP slots as reciprocal+log10, but cancel
    # exactly on zero-padded frames / unused frequency lanes -> no mask needed
    # (padding contributes exactly 0 to both terms).
    cx = jnp.maximum(mx, clamp_eps)
    cy = jnp.maximum(my, clamp_eps)
    log_d = pw * jnp.abs(jnp.log10(cx) - jnp.log10(cy))

    # Deferred lane-dense reduction: (tile_rows, f) -> (8, f) partial sums
    # (pure VPU adds; the final scalar reduce happens outside the kernel).
    g = mag_d.shape[0] // 8
    mag_ref[0, 0] = jnp.sum(mag_d.reshape(g, 8, f), axis=0)
    log_ref[0, 0] = jnp.sum(log_d.reshape(g, 8, f), axis=0)


def _stft_scale_sums(fx, fy, basis, plan, clamp_eps, pw):
    """One STFT scale: returns (sum|X-Y|, sum|log X^p - log Y^p|)."""
    bc, n_rows_pad, rw = fx.shape
    f = plan["F"]
    tile_rows = plan["tile_rows"]
    n_tiles = plan["n_tiles"]
    assert n_rows_pad == n_tiles * tile_rows

    kernel = functools.partial(_stft_l1_kernel, flanes=f,
                               clamp_eps=clamp_eps, pw=pw)

    basis_bytes = int(basis.size) * 4
    if basis_bytes > _BIG_BASIS_BYTES:
        # Large-window basis (~19 MB f32 at n_fft=2048): keep it single-
        # buffered so it is not double-buffered into v7x's 64 MiB VMEM
        # (constant block index -> never re-fetched anyway).
        basis_spec = pl.BlockSpec((rw, 2 * f), lambda b, t: (0, 0),
                                  pipeline_mode=pl.Buffered(1))
        basis_bufs = 1
    else:
        basis_spec = pl.BlockSpec((rw, 2 * f), lambda b, t: (0, 0))
        basis_bufs = 2

    # Working-set estimate: 2 signals x 2 pipeline buffers of the frame tile,
    # the resident basis, and ~8 live (tile_rows, 2f) f32 intermediates.
    est = (2 * 2 * tile_rows * rw + 8 * tile_rows * 2 * f) * 4 \
        + basis_bufs * basis_bytes
    vmem_limit = int(min(max(32 << 20, 2 * est), 100 << 20))

    mag_p, log_p = pl.pallas_call(
        kernel,
        out_shape=(jax.ShapeDtypeStruct((bc, n_tiles, 8, f), jnp.float32),
                   jax.ShapeDtypeStruct((bc, n_tiles, 8, f), jnp.float32)),
        grid_spec=pltpu.PrefetchScalarGridSpec(
            num_scalar_prefetch=0,
            grid=(bc, n_tiles),
            in_specs=[
                pl.BlockSpec((1, tile_rows, rw), lambda b, t: (b, t, 0)),
                pl.BlockSpec((1, tile_rows, rw), lambda b, t: (b, t, 0)),
                basis_spec,
            ],
            out_specs=(pl.BlockSpec((1, 1, 8, f), lambda b, t: (b, t, 0, 0)),
                       pl.BlockSpec((1, 1, 8, f), lambda b, t: (b, t, 0, 0))),
        ),
        compiler_params=pltpu.CompilerParams(
            dimension_semantics=("parallel", "parallel"),
            vmem_limit_bytes=vmem_limit),
    )(fx, fy, basis)
    return jnp.sum(mag_p), jnp.sum(log_p)


# ---------------------------------------------------------------------------
# Host-side planning, framing (torch.stft center=True, reflect pad, periodic
# Hann) and the packed windowed one-sided DFT basis.
# ---------------------------------------------------------------------------
def _plan_scale(t, n_fft):
    hop = n_fft // 4
    nfreq = n_fft // 2 + 1
    pad = n_fft // 2
    if hop < 1:
        raise ValueError(f"window length {n_fft} too small")
    if pad >= t:
        raise ValueError("torch.stft center padding needs n_fft//2 < signal "
                         f"length (n_fft={n_fft}, T={t})")
    nf = 1 + (t + 2 * pad - n_fft) // hop        # frame count (== torch.stft)

    if n_fft <= 128 and 128 % n_fft == 0:
        p = 128 // n_fft          # frames packed per 128-lane row
        half = n_fft              # per-slot freq lanes (>= nfreq, keeps F%128==0)
    else:
        p = 1
        half = _round_up(nfreq, 128)
    f = p * half                  # |X|^2 lanes (vreg aligned)
    rw = p * n_fft                # packed row width == matmul K

    basis_bytes = rw * 2 * f * 4
    basis_bufs = 1 if basis_bytes > _BIG_BASIS_BYTES else 2
    row_bytes = (4 * rw + 8 * 2 * f) * 4         # inputs (x2 buf) + intermediates
    fit_rows = (_VMEM_WORKSET_BUDGET - basis_bufs * basis_bytes) // max(row_bytes, 1)
    fit_rows = max(8, (fit_rows // 8) * 8)

    n_rows = -(-nf // p)
    tile_rows = min(_round_up(n_rows, 8), _TILE_ROWS_TARGET, fit_rows)
    n_tiles = -(-n_rows // tile_rows)
    n_rows_pad = n_tiles * tile_rows

    return dict(n_fft=n_fft, hop=hop, nfreq=nfreq, pad=pad, nf=nf, p=p,
                half=half, F=f, rw=rw, tile_rows=tile_rows, n_tiles=n_tiles,
                n_rows_pad=n_rows_pad)


def _pack_frames(sig2, plan):
    """Reflect-pad, frame, zero-pad and pack p frames per lane-dense row."""
    bc = sig2.shape[0]
    n_fft, hop, pad = plan["n_fft"], plan["hop"], plan["pad"]
    nf, p, n_rows_pad = plan["nf"], plan["p"], plan["n_rows_pad"]

    sp = jnp.pad(sig2, ((0, 0), (pad, pad)), mode="reflect")
    if n_fft == 4 * hop:
        # Frame f == concat of 4 consecutive hop-chunks starting at chunk f
        # (slice+concat, no gather).
        need = (nf + 3) * hop
        ch = sp[:, :need].reshape(bc, nf + 3, hop)
        frames = jnp.concatenate([ch[:, j:j + nf, :] for j in range(4)],
                                 axis=2)                      # (bc, nf, n_fft)
    else:
        idx = np.arange(nf)[:, None] * hop + np.arange(n_fft)[None, :]
        frames = sp[:, idx]
    # Frames beyond nf are all-zero in BOTH x and y, so they contribute
    # exactly 0 to both loss terms (no in-kernel mask required).
    n_frames_pad = n_rows_pad * p
    frames = jnp.pad(frames, ((0, 0), (0, n_frames_pad - nf), (0, 0)))
    return frames.reshape(bc, n_rows_pad, p * n_fft)


def _stft_basis(plan):
    """Packed windowed one-sided DFT basis.

    basis[s*n_fft + n, s*half + k]     =  win[n] * cos(2*pi*n*k / n_fft)
    basis[s*n_fft + n, F + s*half + k] = -win[n] * sin(2*pi*n*k / n_fft)
    so (packed_row @ basis)[:, :F] / [:, F:] are the real / imag parts of all
    p frames packed in that row (periodic Hann window, as torch.hann_window).
    """
    n_fft, nfreq, p, half, f = (plan["n_fft"], plan["nfreq"], plan["p"],
                                plan["half"], plan["F"])
    n = np.arange(n_fft, dtype=np.float64)
    k = np.arange(nfreq, dtype=np.float64)
    win = 0.5 - 0.5 * np.cos(2.0 * np.pi * n / n_fft)
    ang = 2.0 * np.pi * np.outer(n, k) / n_fft
    bre = (win[:, None] * np.cos(ang)).astype(np.float32)
    bim = (-win[:, None] * np.sin(ang)).astype(np.float32)
    basis = np.zeros((p * n_fft, 2 * f), dtype=np.float32)
    for s in range(p):
        basis[s * n_fft:(s + 1) * n_fft, s * half:s * half + nfreq] = bre
        basis[s * n_fft:(s + 1) * n_fft, f + s * half:f + s * half + nfreq] = bim
    return jnp.asarray(basis)


def multi_scale_stft_loss(x, y, window_lengths=(4096, 2048, 1024, 512),
                          clamp_eps=1e-5, mag_weight=1.0, log_weight=1.0,
                          pw=2.0, weight=1.0):
    """Forward pass of MultiScaleSTFTLoss (loss_fn = L1 with mean reduction)."""
    del weight  # the module stores it but does not apply it in forward()
    b, c, t = x.shape
    x2 = x.reshape(b * c, t).astype(jnp.float32)
    y2 = y.reshape(b * c, t).astype(jnp.float32)
    loss = jnp.float32(0.0)
    for w in window_lengths:
        plan = _plan_scale(t, w)
        fx = _pack_frames(x2, plan)
        fy = _pack_frames(y2, plan)
        basis = _stft_basis(plan)
        mag_sum, log_sum = _stft_scale_sums(fx, fy, basis, plan, clamp_eps, pw)
        n_elems = jnp.float32((b * c) * plan["nfreq"] * plan["nf"])  # L1 'mean'
        loss = loss + log_weight * (log_sum / n_elems)
        loss = loss + mag_weight * (mag_sum / n_elems)
    return loss


# ---------------------------------------------------------------------------
# Pure-JAX reference (explicit framing, same math, no Pallas) for sanity.
# ---------------------------------------------------------------------------
def _reference_loss(x, y, window_lengths=(64, 32), clamp_eps=1e-5,
                    mag_weight=1.0, log_weight=1.0, pw=2.0):
    b, c, t = x.shape
    x2 = x.reshape(b * c, t).astype(jnp.float32)
    y2 = y.reshape(b * c, t).astype(jnp.float32)
    hi = lax.Precision.HIGHEST
    loss = jnp.float32(0.0)
    for w in window_lengths:
        hop = w // 4
        nfreq = w // 2 + 1
        pad = w // 2
        n = np.arange(w, dtype=np.float64)
        k = np.arange(nfreq, dtype=np.float64)
        win = 0.5 - 0.5 * np.cos(2.0 * np.pi * n / w)
        ang = 2.0 * np.pi * np.outer(n, k) / w
        bre = jnp.asarray((win[:, None] * np.cos(ang)).astype(np.float32))
        bim = jnp.asarray((-win[:, None] * np.sin(ang)).astype(np.float32))

        def frames(s):
            sp = jnp.pad(s, ((0, 0), (pad, pad)), mode="reflect")
            nfr = 1 + (sp.shape[-1] - w) // hop
            idx = np.arange(nfr)[:, None] * hop + np.arange(w)[None, :]
            return sp[:, idx].reshape(-1, w)

        fx, fy = frames(x2), frames(y2)
        xm = jnp.sqrt(jnp.matmul(fx, bre, precision=hi) ** 2 +
                      jnp.matmul(fx, bim, precision=hi) ** 2)
        ym = jnp.sqrt(jnp.matmul(fy, bre, precision=hi) ** 2 +
                      jnp.matmul(fy, bim, precision=hi) ** 2)
        loss = loss + mag_weight * jnp.mean(jnp.abs(xm - ym))
        xl = jnp.log10(jnp.maximum(xm, clamp_eps) ** pw)
        yl = jnp.log10(jnp.maximum(ym, clamp_eps) ** pw)
        loss = loss + log_weight * jnp.mean(jnp.abs(xl - yl))
    return loss


if __name__ == "__main__":
    # Small shapes consistent with the module: (batch=2, channels=1, time=256);
    # small window lengths so torch.stft's reflect center-padding is valid.
    key = jax.random.PRNGKey(0)
    kx, ky = jax.random.split(key)
    B, C, T = 2, 1, 256
    x = jax.random.normal(kx, (B, C, T), dtype=jnp.float32)
    y = jax.random.normal(ky, (B, C, T), dtype=jnp.float32)

    window_lengths = (64, 32)
    loss_fn = jax.jit(functools.partial(multi_scale_stft_loss,
                                        window_lengths=window_lengths))
    loss = loss_fn(x, y)
    jax.block_until_ready(loss)

    ref = _reference_loss(x, y, window_lengths=window_lengths)
    np.testing.assert_allclose(np.asarray(loss), np.asarray(ref),
                               rtol=2e-2, atol=1e-3)
    print("KERNEL_OK")
</pallas_src>

<mosaic_0001>
module attributes {stable_mosaic.version = 11 : i64} {
  func.func @_stft_l1_kernel(%arg0: i32, %arg1: i32, %arg2: memref<1x16x128xf32, #tpu.memory_space<vmem>>, %arg3: memref<1x16x128xf32, #tpu.memory_space<vmem>>, %arg4: memref<128x256xf32, #tpu.memory_space<vmem>>, %arg5: memref<1x1x8x128xf32, #tpu.memory_space<vmem>>, %arg6: memref<1x1x8x128xf32, #tpu.memory_space<vmem>>) attributes {dimension_semantics = [#tpu.dimension_semantics<parallel>, #tpu.dimension_semantics<parallel>], iteration_bounds = array<i64: 2, 1>, scalar_prefetch = 0 : i64, scratch_operands = 0 : i64, tpu.core_type = #tpu.core_type<tc>, window_params = [{transform_indices = @transform_0, window_bounds = array<i64: 1, 16, 128>}, {transform_indices = @transform_1, window_bounds = array<i64: 1, 16, 128>}, {pipeline_mode = #tpu.pipeline_mode<synchronous>, transform_indices = @transform_2, window_bounds = array<i64: 128, 256>}, {transform_indices = @transform_3, window_bounds = array<i64: 1, 1, 8, 128>}, {transform_indices = @transform_4, window_bounds = array<i64: 1, 1, 8, 128>}]} {
    %c0 = arith.constant 0 : index
    %c0_0 = arith.constant 0 : index
    %0 = vector.load %arg4[%c0, %c0_0] : memref<128x256xf32, #tpu.memory_space<vmem>>, vector<128x256xf32>
    %c0_1 = arith.constant 0 : index
    %c0_2 = arith.constant 0 : index
    %c0_3 = arith.constant 0 : index
    %1 = vector.load %arg2[%c0_1, %c0_2, %c0_3] : memref<1x16x128xf32, #tpu.memory_space<vmem>>, vector<1x16x128xf32>
    %2 = vector.shape_cast %1 : vector<1x16x128xf32> to vector<16x128xf32>
    %cst = arith.constant dense<0.000000e+00> : vector<16x256xf32>
    %3 = tpu.matmul %2, %0, %cst {dimension_numbers = #tpu.dot_dimension_numbers<[1], [0], [0], [1], [0, 0, 1, 1], [], []>, precision = #tpu.contract_precision<fp32>} : vector<16x128xf32>, vector<128x256xf32>, vector<16x256xf32> -> vector<16x256xf32>
    %c0_4 = arith.constant 0 : index
    %c0_5 = arith.constant 0 : index
    %c0_6 = arith.constant 0 : index
    %4 = vector.load %arg3[%c0_4, %c0_5, %c0_6] : memref<1x16x128xf32, #tpu.memory_space<vmem>>, vector<1x16x128xf32>
    %5 = vector.shape_cast %4 : vector<1x16x128xf32> to vector<16x128xf32>
    %cst_7 = arith.constant dense<0.000000e+00> : vector<16x256xf32>
    %6 = tpu.matmul %5, %0, %cst_7 {dimension_numbers = #tpu.dot_dimension_numbers<[1], [0], [0], [1], [0, 0, 1, 1], [], []>, precision = #tpu.contract_precision<fp32>} : vector<16x128xf32>, vector<128x256xf32>, vector<16x256xf32> -> vector<16x256xf32>
    %7 = arith.mulf %3, %3 : vector<16x256xf32>
    %8 = arith.mulf %6, %6 : vector<16x256xf32>
    %9 = vector.extract_strided_slice %7 {offsets = [0, 0], sizes = [16, 128], strides = [1, 1]} : vector<16x256xf32> to vector<16x128xf32>
    %10 = vector.extract_strided_slice %7 {offsets = [0, 128], sizes = [16, 128], strides = [1, 1]} : vector<16x256xf32> to vector<16x128xf32>
    %11 = arith.addf %9, %10 : vector<16x128xf32>
    %12 = vector.extract_strided_slice %8 {offsets = [0, 0], sizes = [16, 128], strides = [1, 1]} : vector<16x256xf32> to vector<16x128xf32>
    %13 = vector.extract_strided_slice %8 {offsets = [0, 128], sizes = [16, 128], strides = [1, 1]} : vector<16x256xf32> to vector<16x128xf32>
    %14 = arith.addf %12, %13 : vector<16x128xf32>
    %15 = math.sqrt %11 : vector<16x128xf32>
    %16 = math.sqrt %14 : vector<16x128xf32>
    %17 = arith.subf %15, %16 : vector<16x128xf32>
    %18 = math.absf %17 : vector<16x128xf32>
    %cst_8 = arith.constant 9.99999974E-6 : f32
    %19 = vector.broadcast %cst_8 : f32 to vector<16x128xf32>
    %20 = arith.maximumf %15, %19 : vector<16x128xf32>
    %cst_9 = arith.constant 9.99999974E-6 : f32
    %21 = vector.broadcast %cst_9 : f32 to vector<16x128xf32>
    %22 = arith.maximumf %16, %21 : vector<16x128xf32>
    %23 = math.log %20 : vector<16x128xf32>
    %cst_10 = arith.constant 0.434294492 : f32
    %24 = vector.broadcast %cst_10 : f32 to vector<16x128xf32>
    %25 = arith.mulf %23, %24 : vector<16x128xf32>
    %26 = math.log %22 : vector<16x128xf32>
    %cst_11 = arith.constant 0.434294492 : f32
    %27 = vector.broadcast %cst_11 : f32 to vector<16x128xf32>
    %28 = arith.mulf %26, %27 : vector<16x128xf32>
    %29 = arith.subf %25, %28 : vector<16x128xf32>
    %30 = math.absf %29 : vector<16x128xf32>
    %cst_12 = arith.constant 2.000000e+00 : f32
    %31 = vector.broadcast %cst_12 : f32 to vector<16x128xf32>
    %32 = arith.mulf %31, %30 : vector<16x128xf32>
    %33 = vector.shape_cast %18 : vector<16x128xf32> to vector<2x8x128xf32>
    %cst_13 = arith.constant dense<0.000000e+00> : vector<8x128xf32>
    %34 = vector.multi_reduction <add>, %33, %cst_13 [0] : vector<2x8x128xf32> to vector<8x128xf32>
    %c0_14 = arith.constant 0 : index
    %c0_15 = arith.constant 0 : index
    %c0_16 = arith.constant 0 : index
    %c0_17 = arith.constant 0 : index
    %35 = vector.load %arg5[%c0_14, %c0_15, %c0_16, %c0_17] : memref<1x1x8x128xf32, #tpu.memory_space<vmem>>, vector<1x1x8x128xf32>
    %36 = vector.shape_cast %35 : vector<1x1x8x128xf32> to vector<8x128xf32>
    %37 = vector.shape_cast %34 : vector<8x128xf32> to vector<1x1x8x128xf32>
    tpu.vector_store %arg5[%c0_14, %c0_15, %c0_16, %c0_17], %37 {strides = array<i32>} : memref<1x1x8x128xf32, #tpu.memory_space<vmem>>, vector<1x1x8x128xf32>,
    %38 = vector.shape_cast %32 : vector<16x128xf32> to vector<2x8x128xf32>
    %cst_18 = arith.constant dense<0.000000e+00> : vector<8x128xf32>
    %39 = vector.multi_reduction <add>, %38, %cst_18 [0] : vector<2x8x128xf32> to vector<8x128xf32>
    %c0_19 = arith.constant 0 : index
    %c0_20 = arith.constant 0 : index
    %c0_21 = arith.constant 0 : index
    %c0_22 = arith.constant 0 : index
    %40 = vector.load %arg6[%c0_19, %c0_20, %c0_21, %c0_22] : memref<1x1x8x128xf32, #tpu.memory_space<vmem>>, vector<1x1x8x128xf32>
    %41 = vector.shape_cast %40 : vector<1x1x8x128xf32> to vector<8x128xf32>
    %42 = vector.shape_cast %39 : vector<8x128xf32> to vector<1x1x8x128xf32>
    tpu.vector_store %arg6[%c0_19, %c0_20, %c0_21, %c0_22], %42 {strides = array<i32>} : memref<1x1x8x128xf32, #tpu.memory_space<vmem>>, vector<1x1x8x128xf32>,
    return
  }
  func.func @transform_0(%arg0: i32, %arg1: i32) -> (i32, i32, i32) {
    %c0_i32 = arith.constant 0 : i32
    %c0_i32_0 = arith.constant 0 : i32
    return %arg0, %arg1, %c0_i32 : i32, i32, i32
  }
  func.func @transform_1(%arg0: i32, %arg1: i32) -> (i32, i32, i32) {
    %c0_i32 = arith.constant 0 : i32
    %c0_i32_0 = arith.constant 0 : i32
    return %arg0, %arg1, %c0_i32 : i32, i32, i32
  }
  func.func @transform_2(%arg0: i32, %arg1: i32) -> (i32, i32) {
    %c0_i32 = arith.constant 0 : i32
    %c0_i32_0 = arith.constant 0 : i32
    %c0_i32_1 = arith.constant 0 : i32
    return %c0_i32, %c0_i32_0 : i32, i32
  }
  func.func @transform_3(%arg0: i32, %arg1: i32) -> (i32, i32, i32, i32) {
    %c0_i32 = arith.constant 0 : i32
    %c0_i32_0 = arith.constant 0 : i32
    %c0_i32_1 = arith.constant 0 : i32
    return %arg0, %arg1, %c0_i32, %c0_i32_0 : i32, i32, i32, i32
  }
  func.func @transform_4(%arg0: i32, %arg1: i32) -> (i32, i32, i32, i32) {
    %c0_i32 = arith.constant 0 : i32
    %c0_i32_0 = arith.constant 0 : i32
    %c0_i32_1 = arith.constant 0 : i32
    return %arg0, %arg1, %c0_i32, %c0_i32_0 : i32, i32, i32, i32
  }
}

</mosaic_0001>

<llo_original>
// kernel: multi_scale_stft_loss.2
$region0: #{multi_scale_stft_loss.2}
  #allocation0 [shape = 'u32[]', space=smem, size = 0x4, offset = 0x4, fixed_abs, tag = 'smem constant byte address 0x4 - core index']
  #allocation1 [shape = 'u32[72,128]{1,0:T(1,128)}', space=vmem, size = 0x9000, scoped, tag = 'internal scratch']
  %s0 = inlined_call_operand.vmem [shape: f32[2,16,128], index: 0, kind: input, shape index: {}]
  %s1 = inlined_call_operand.vmem [shape: f32[2,16,128], index: 1, kind: input, shape index: {}]
  %s2 = inlined_call_operand.vmem [shape: f32[128,256], index: 2, kind: input, shape index: {}]
  %s3 = inlined_call_operand.vmem [shape: f32[2,1,8,128], index: 3, kind: output, shape index: {0}]
  %s4 = inlined_call_operand.vmem [shape: f32[2,1,8,128], index: 4, kind: output, shape index: {1}]
  %5 = xla_tuple %s3, %s4
  %s6 = sld [smem:[#allocation0]]
  $region53: #{multi_scale_stft_loss.2} parent=0
    _
  %s8 = ssub.s32 1, %s6
  %s9 = scalar_select 0, %s8, %s6
  loop: start=0, step=1, limit=4
  $region2: #{multi_scale_stft_loss.2} parent=0 // loop_pre_header
    _
  $region3: #{multi_scale_stft_loss.2} parent=0 // loop_header
    %s11 = sphi 0, %s15
    %p12 = scmp.ge.s32.totalorder %s11, 4
    %s18 = sphi 0, %s30
    %s19 = sphi 0, %s26
    %s20 = sphi 0, %s18
    %s21 = sphi 0, %s19
    %s22 = sphi 0, %s20
    %s23 = sphi 0, %s21
    %s35 = sphi 0, %s37
    %s38 = sphi 0, %s35
    %s39 = sphi 0, %s38
    %s55 = sphi 0, %s39
    %s63 = sphi 0, %s65
    %s66 = sphi 0, %s63
    %s67 = sphi 0, %s66
    %s83 = sphi 0, %s67
    %s87 = sphi 0, %s87
    %s89 = sphi 0, %s87
    %s90 = sphi 0, %s89
    %s104 = sphi 0, %s90
    %s112 = sphi 0, %s114
    %s115 = sphi 0, %s112
    %s116 = sphi 0, %s115
    %s132 = sphi 0, %s116
    %s140 = sphi 0, %s142
    %s143 = sphi 0, %s140
    %s144 = sphi 0, %s143
    %s160 = sphi 0, %s144
  $region4: #{multi_scale_stft_loss.2} parent=0 // loop_header_branch
    %14 = sbr.rel (%p12) target = $region8
  $region5: #{multi_scale_stft_loss.2} parent=0 // loop_body
    %s16 = ssub.s32 %s11, 1
    %s17 = ssub.s32 %s11, 2
    %s24 = sadd.s32 1, %s19
    %p25 = scmp.ge.s32.totalorder %s24, 1
    %s26 = scalar_select %p25, 0, %s24
    %s27 = sadd.s32 1, %s18
    %s28 = scalar_select %p25, %s27, %s18
    %p29 = scmp.ge.s32.totalorder %s28, 2
    %s30 = scalar_select %p29, 0, %s28
    %s31 = ssub.s32 %s18, %s30
    %s32 = ssub.s32 %s19, %s26
    %s33 = sor.u32 %s31, %s32
    %p34 = scmp.eq.s32.totalorder %s33, 0
    %s36 = sadd.s32 %s35, 1
    %s37 = scalar_select %p34, %s35, %s36
    %p40 = pneg %p34
    %p41 = scmp.eq.s32.totalorder %s11, 1
    %p42 = por %p40, %p41
    %p43 = scmp.ne.s32.totalorder %s35, %s38
    %p44 = scmp.eq.s32.totalorder %s11, 0
    %p45 = por %p43, %p44
    %p46 = scmp.ne.s32.totalorder %s35, %s38
    %p47 = scmp.eq.s32.totalorder %s16, 1
    %p48 = por %p46, %p47
    %p49 = scmp.ne.s32.totalorder %s38, %s39
    %p50 = scmp.eq.s32.totalorder %s16, 0
    %p51 = por %p49, %p50
    %p52 = scmp.ne.s32.totalorder %s38, %s39
    %p53 = scmp.eq.s32.totalorder %s17, 1
    %p54 = por %p52, %p53
    %p56 = scmp.ne.s32.totalorder %s39, %s55
    %p57 = scmp.eq.s32.totalorder %s17, 0
    %p58 = por %p56, %p57
    %s59 = ssub.s32 %s18, %s30
    %s60 = ssub.s32 %s19, %s26
    %s61 = sor.u32 %s59, %s60
    %p62 = scmp.eq.s32.totalorder %s61, 0
    %s64 = sadd.s32 %s63, 1
    %s65 = scalar_select %p62, %s63, %s64
    %p68 = pneg %p62
    %p69 = scmp.eq.s32.totalorder %s11, 1
    %p70 = por %p68, %p69
    %p71 = scmp.ne.s32.totalorder %s63, %s66
    %p72 = scmp.eq.s32.totalorder %s11, 0
    %p73 = por %p71, %p72
    %p74 = scmp.ne.s32.totalorder %s63, %s66
    %p75 = scmp.eq.s32.totalorder %s16, 1
    %p76 = por %p74, %p75
    %p77 = scmp.ne.s32.totalorder %s66, %s67
    %p78 = scmp.eq.s32.totalorder %s16, 0
    %p79 = por %p77, %p78
    %p80 = scmp.ne.s32.totalorder %s66, %s67
    %p81 = scmp.eq.s32.totalorder %s17, 1
    %p82 = por %p80, %p81
    %p84 = scmp.ne.s32.totalorder %s67, %s83
    %p85 = scmp.eq.s32.totalorder %s17, 0
    %p86 = por %p84, %p85
    %s88 = sadd.s32 %s87, 1
    %p91 = scmp.eq.s32.totalorder %s11, 1
    %p92 = scmp.ne.s32.totalorder %s87, %s89
    %p93 = scmp.eq.s32.totalorder %s11, 0
    %p94 = por %p92, %p93
    %p95 = scmp.ne.s32.totalorder %s87, %s89
    %p96 = scmp.eq.s32.totalorder %s16, 1
    %p97 = por %p95, %p96
    %p98 = scmp.ne.s32.totalorder %s89, %s90
    %p99 = scmp.eq.s32.totalorder %s16, 0
    %p100 = por %p98, %p99
    %p101 = scmp.ne.s32.totalorder %s89, %s90
    %p102 = scmp.eq.s32.totalorder %s17, 1
    %p103 = por %p101, %p102
    %p105 = scmp.ne.s32.totalorder %s90, %s104
    %p106 = scmp.eq.s32.totalorder %s17, 0
    %p107 = por %p105, %p106
    %s108 = ssub.s32 %s18, %s30
    %s109 = ssub.s32 %s19, %s26
    %s110 = sor.u32 %s108, %s109
    %p111 = scmp.eq.s32.totalorder %s110, 0
    %s113 = sadd.s32 %s112, 1
    %s114 = scalar_select %p111, %s112, %s113
    %p117 = pneg %p111
    %p118 = scmp.eq.s32.totalorder %s11, 1
    %p119 = por %p117, %p118
    %p120 = scmp.ne.s32.totalorder %s112, %s115
    %p121 = scmp.eq.s32.totalorder %s11, 0
    %p122 = por %p120, %p121
    %p123 = scmp.ne.s32.totalorder %s112, %s115
    %p124 = scmp.eq.s32.totalorder %s16, 1
    %p125 = por %p123, %p124
    %p126 = scmp.ne.s32.totalorder %s115, %s116
    %p127 = scmp.eq.s32.totalorder %s16, 0
    %p128 = por %p126, %p127
    %p129 = scmp.ne.s32.totalorder %s115, %s116
    %p130 = scmp.eq.s32.totalorder %s17, 1
    %p131 = por %p129, %p130
    %p133 = scmp.ne.s32.totalorder %s116, %s132
    %p134 = scmp.eq.s32.totalorder %s17, 0
    %p135 = por %p133, %p134
    %s136 = ssub.s32 %s18, %s30
    %s137 = ssub.s32 %s19, %s26
    %s138 = sor.u32 %s136, %s137
    %p139 = scmp.eq.s32.totalorder %s138, 0
    %s141 = sadd.s32 %s140, 1
    %s142 = scalar_select %p139, %s140, %s141
    %p145 = pneg %p139
    %p146 = scmp.eq.s32.totalorder %s11, 1
    %p147 = por %p145, %p146
    %p148 = scmp.ne.s32.totalorder %s140, %s143
    %p149 = scmp.eq.s32.totalorder %s11, 0
    %p150 = por %p148, %p149
    %p151 = scmp.ne.s32.totalorder %s140, %s143
    %p152 = scmp.eq.s32.totalorder %s16, 1
    %p153 = por %p151, %p152
    %p154 = scmp.ne.s32.totalorder %s143, %s144
    %p155 = scmp.eq.s32.totalorder %s16, 0
    %p156 = por %p154, %p155
    %p157 = scmp.ne.s32.totalorder %s143, %s144
    %p158 = scmp.eq.s32.totalorder %s17, 1
    %p159 = por %p157, %p158
    %p161 = scmp.ne.s32.totalorder %s144, %s160
    %p162 = scmp.eq.s32.totalorder %s17, 0
    %p163 = por %p161, %p162
    %p164 = scmp.le.s32.totalorder 1, %s11
    %p165 = scmp.lt.s32.totalorder %s11, 3
    %p166 = pnand %p164, %p165
    %p167 = pneg %p166
    // Predicated region
    $region9: #{multi_scale_stft_loss.2} parent=5 // pred_check
      _
    $region10: #{multi_scale_stft_loss.2} parent=5 // pred_check_branch
      %169 = sbr.rel (%p166) target = $region12
    $region11: #{multi_scale_stft_loss.2} parent=5 // pred_region
      %s170 = ssub.s32 %s11, 1
      // Predicated region
      $region13: #{multi_scale_stft_loss.2} parent=11 // pred_check
        %p171 = pneg %p100
      $region14: #{multi_scale_stft_loss.2} parent=11 // pred_check_branch
        %173 = sbr.rel (%p171) target = $region16
      $region15: #{multi_scale_stft_loss.2} parent=11 // pred_region
        _
      $region16: #{multi_scale_stft_loss.2} parent=11 // pred_fallthru
        _
    $region12: #{multi_scale_stft_loss.2} parent=5 // pred_fallthru
      _
    %p174 = scmp.lt.s32.totalorder %s11, 2
    // Predicated region
    $region17: #{multi_scale_stft_loss.2} parent=5 // pred_check
      %p175 = pneg %p174
    $region18: #{multi_scale_stft_loss.2} parent=5 // pred_check_branch
      %177 = sbr.rel (%p175) target = $region20
    $region19: #{multi_scale_stft_loss.2} parent=5 // pred_region
      // Predicated region
      $region21: #{multi_scale_stft_loss.2} parent=19 // pred_check
        %p178 = pneg %p45
      $region22: #{multi_scale_stft_loss.2} parent=19 // pred_check_branch
        %180 = sbr.rel (%p178) target = $region24
      $region23: #{multi_scale_stft_loss.2} parent=19 // pred_region
        %s181 = smul.u32 2, %s19
        %p182 = scmp.lt.s32.totalorder %s18, 1
        %s183 = scalar_select %p182, %s18, 1
        %p184 = scmp.lt.s32.totalorder %s181, 1
        %s185 = scalar_select %p184, %s181, 1
        %s186 = smul.addr %s183, 2
        %s187 = sadd.s32 %s185, %s186
        %s188 = smul.addr %s187, 8
        %s189 = scalar_lea.vmem %s0, %s188
        %s190 = smul.u32 2, %s19
      $region24: #{multi_scale_stft_loss.2} parent=19 // pred_fallthru
        _
      // Predicated region
      $region25: #{multi_scale_stft_loss.2} parent=19 // pred_check
        %p191 = pneg %p73
      $region26: #{multi_scale_stft_loss.2} parent=19 // pred_check_branch
        %193 = sbr.rel (%p191) target = $region28
      $region27: #{multi_scale_stft_loss.2} parent=19 // pred_region
        %s194 = smul.u32 2, %s19
        %p195 = scmp.lt.s32.totalorder %s18, 1
        %s196 = scalar_select %p195, %s18, 1
        %p197 = scmp.lt.s32.totalorder %s194, 1
        %s198 = scalar_select %p197, %s194, 1
        %s199 = smul.addr %s196, 2
        %s200 = sadd.s32 %s198, %s199
        %s201 = smul.addr %s200, 8
        %s202 = scalar_lea.vmem %s1, %s201
        %s203 = smul.u32 2, %s19
      $region28: #{multi_scale_stft_loss.2} parent=19 // pred_fallthru
        _
    $region20: #{multi_scale_stft_loss.2} parent=5 // pred_fallthru
      _
    %p204 = scmp.le.s32.totalorder 1, %s11
    %p205 = scmp.lt.s32.totalorder %s11, 3
    %p206 = pnand %p204, %p205
    %p207 = pneg %p206
    // Predicated region
    $region29: #{multi_scale_stft_loss.2} parent=5 // pred_check
      _
    $region30: #{multi_scale_stft_loss.2} parent=5 // pred_check_branch
      %209 = sbr.rel (%p206) target = $region32
    $region31: #{multi_scale_stft_loss.2} parent=5 // pred_region
      %s210 = ssub.s32 %s11, 1
      %s211 = smul.u32 2, %s21
      %p212 = scmp.lt.s32.totalorder %s20, 1
      %s213 = scalar_select %p212, %s20, 1
      %p214 = scmp.lt.s32.totalorder %s211, 1
      %s215 = scalar_select %p214, %s211, 1
      %s216 = smul.addr %s213, 2
      %s217 = sadd.s32 %s215, %s216
      %s218 = smul.addr %s217, 8
      %s219 = scalar_lea.vmem %s0, %s218
      %p220 = pneg %p51
      %p221 = pneg %p48
      %s222 = smul.u32 2, %s21
      %p223 = scmp.lt.s32.totalorder %s20, 1
      %s224 = scalar_select %p223, %s20, 1
      %p225 = scmp.lt.s32.totalorder %s222, 1
      %s226 = scalar_select %p225, %s222, 1
      %s227 = smul.addr %s224, 2
      %s228 = sadd.s32 %s226, %s227
      %s229 = smul.addr %s228, 8
      %s230 = scalar_lea.vmem %s1, %s229
      %p231 = pneg %p79
      %p232 = pneg %p76
      %p233 = pneg %p100
      %p234 = pneg %p97
      %p235 = pneg %p128
      %p236 = pneg %p125
      %p237 = scmp.lt.s32.totalorder %s20, 1
      %s238 = scalar_select %p237, %s20, 1
      %p239 = scmp.lt.s32.totalorder %s21, 0
      %s240 = scalar_select %p239, %s21, 0
      %s241 = sadd.s32 %s240, %s238
      %s242 = smul.addr %s241, 8
      %s243 = scalar_lea.vmem %s3, %s242
      %p244 = pneg %p156
      %p245 = pneg %p153
      %p246 = scmp.lt.s32.totalorder %s20, 1
      %s247 = scalar_select %p246, %s20, 1
      %p248 = scmp.lt.s32.totalorder %s21, 0
      %s249 = scalar_select %p248, %s21, 0
      %s250 = sadd.s32 %s249, %s247
      %s251 = smul.addr %s250, 8
      %s252 = scalar_lea.vmem %s4, %s251
      %s253 = smul.u32 2, %s21
      %p254 = scmp.lt.s32.totalorder %s20, 1
      %s255 = scalar_select %p254, %s20, 1
      %p256 = scmp.lt.s32.totalorder %s253, 1
      %s257 = scalar_select %p256, %s253, 1
      %s258 = smul.addr %s255, 2
      %s259 = sadd.s32 %s257, %s258
      %s260 = smul.addr %s259, 8
      %s261 = scalar_lea.vmem %s0, %s260
      %s262 = smul.u32 2, %s21
      %s263 = smul.u32 2, %s21
      %p264 = scmp.lt.s32.totalorder %s20, 1
      %s265 = scalar_select %p264, %s20, 1
      %p266 = scmp.lt.s32.totalorder %s263, 1
      %s267 = scalar_select %p266, %s263, 1
      %s268 = smul.addr %s265, 2
      %s269 = sadd.s32 %s267, %s268
      %s270 = smul.addr %s269, 8
      %s271 = scalar_lea.vmem %s1, %s270
      %s272 = smul.u32 2, %s21
      %p273 = scmp.lt.s32.totalorder %s20, 1
      %s274 = scalar_select %p273, %s20, 1
      %p275 = scmp.lt.s32.totalorder %s21, 0
      %s276 = scalar_select %p275, %s21, 0
      %s277 = sadd.s32 %s276, %s274
      %s278 = smul.addr %s277, 8
      %s279 = scalar_lea.vmem %s3, %s278
      %p280 = scmp.lt.s32.totalorder %s20, 1
      %s281 = scalar_select %p280, %s20, 1
      %p282 = scmp.lt.s32.totalorder %s21, 0
      %s283 = scalar_select %p282, %s21, 0
      %s284 = sadd.s32 %s283, %s281
      %s285 = smul.addr %s284, 8
      %s286 = scalar_lea.vmem %s4, %s285
      %v287 = vld [vmem:[%s2] sm:$0xff]
      %v288 = vld [vmem:[%s2 + $0x8] sm:$0xff]
      %v289 = vld [vmem:[%s2 + $0x10] sm:$0xff]
      %v290 = vld [vmem:[%s2 + $0x18] sm:$0xff]
      %v291 = vld [vmem:[%s2 + $0x20] sm:$0xff]
      %v292 = vld [vmem:[%s2 + $0x28] sm:$0xff]
      %v293 = vld [vmem:[%s2 + $0x30] sm:$0xff]
      %v294 = vld [vmem:[%s2 + $0x38] sm:$0xff]
      %v295 = vld [vmem:[%s2 + $0x40] sm:$0xff]
      %v296 = vld [vmem:[%s2 + $0x48] sm:$0xff]
      %v297 = vld [vmem:[%s2 + $0x50] sm:$0xff]
      %v298 = vld [vmem:[%s2 + $0x58] sm:$0xff]
      %v299 = vld [vmem:[%s2 + $0x60] sm:$0xff]
      %v300 = vld [vmem:[%s2 + $0x68] sm:$0xff]
      %v301 = vld [vmem:[%s2 + $0x70] sm:$0xff]
      %v302 = vld [vmem:[%s2 + $0x78] sm:$0xff]
      %v303 = vld [vmem:[%s2 + $0x80] sm:$0xff]
      %v304 = vld [vmem:[%s2 + $0x88] sm:$0xff]
      %v305 = vld [vmem:[%s2 + $0x90] sm:$0xff]
      %v306 = vld [vmem:[%s2 + $0x98] sm:$0xff]
      %v307 = vld [vmem:[%s2 + $0xa0] sm:$0xff]
      %v308 = vld [vmem:[%s2 + $0xa8] sm:$0xff]
      %v309 = vld [vmem:[%s2 + $0xb0] sm:$0xff]
      %v310 = vld [vmem:[%s2 + $0xb8] sm:$0xff]
      %v311 = vld [vmem:[%s2 + $0xc0] sm:$0xff]
      %v312 = vld [vmem:[%s2 + $0xc8] sm:$0xff]
      %v313 = vld [vmem:[%s2 + $0xd0] sm:$0xff]
      %v314 = vld [vmem:[%s2 + $0xd8] sm:$0xff]
      %v315 = vld [vmem:[%s2 + $0xe0] sm:$0xff]
      %v316 = vld [vmem:[%s2 + $0xe8] sm:$0xff]
      %v317 = vld [vmem:[%s2 + $0xf0] sm:$0xff]
      %v318 = vld [vmem:[%s2 + $0xf8] sm:$0xff]
      %v319 = vld [vmem:[%s261] sm:$0xff]
      %v320 = vld [vmem:[%s261 + $0x8] sm:$0xff]
      %v321 = vand.u32 %v317, 4294901760
      %322 = vmatpush.msra.mxu0 %v321
      %v323 = vand.u32 %v315, 4294901760
      %324 = vmatpush.msra.mxu0 %v323
      %v325 = vand.u32 %v313, 4294901760
      %326 = vmatpush.msra.mxu0 %v325
      %v327 = vand.u32 %v311, 4294901760
      %328 = vmatpush.msra.mxu0 %v327
      %v329 = vand.u32 %v309, 4294901760
      %330 = vmatpush.msra.mxu0 %v329
      %v331 = vand.u32 %v307, 4294901760
      %332 = vmatpush.msra.mxu0 %v331
      %v333 = vand.u32 %v305, 4294901760
      %334 = vmatpush.msra.mxu0 %v333
      %v335 = vand.u32 %v303, 4294901760
      %336 = vmatpush.msra.mxu0 %v335
      %v337 = vand.u32 %v301, 4294901760
      %338 = vmatpush.msra.mxu0 %v337
      %v339 = vand.u32 %v299, 4294901760
      %340 = vmatpush.msra.mxu0 %v339
      %v341 = vand.u32 %v297, 4294901760
      %342 = vmatpush.msra.mxu0 %v341
      %v343 = vand.u32 %v295, 4294901760
      %344 = vmatpush.msra.mxu0 %v343
      %v345 = vand.u32 %v293, 4294901760
      %346 = vmatpush.msra.mxu0 %v345
      %v347 = vand.u32 %v291, 4294901760
      %348 = vmatpush.msra.mxu0 %v347
      %v349 = vand.u32 %v289, 4294901760
      %350 = vmatpush.msra.mxu0 %v349
      %v351 = vand.u32 %v287, 4294901760
      %352 = vmatpush.msra.mxu0 %v351
      %v353 = vand.u32 %v319, 4294901760
      %v354 = vsub.f32 %v319, %v353
      %v355 = vand.u32 %v354, 4294901760
      %v356 = vsub.f32 %v354, %v355
      %v357 = vand.u32 %v356, 4294901760
      %358 = vmatmul.f32.gmra.mxu0 %v357
      %v359 = vpop.f32.mrf.mxu0
      %v360 = vadd.f32 0.0, %v359
      %v361 = vand.u32 %v320, 4294901760
      %v362 = vsub.f32 %v320, %v361
      %v363 = vand.u32 %v362, 4294901760
      %v364 = vsub.f32 %v362, %v363
      %v365 = vand.u32 %v364, 4294901760
      %366 = vmatmul.f32.gmra.mxu0 %v365
      %v367 = vpop.f32.mrf.mxu0
      %v368 = vadd.f32 0.0, %v367
      %369 = vdwg.mxu0
      %v370 = vand.u32 %v317, 4294901760
      %v371 = vsub.f32 %v317, %v370
      %v372 = vand.u32 %v371, 4294901760
      %v373 = vsub.f32 %v371, %v372
      %v374 = vand.u32 %v373, 4294901760
      %375 = vmatpush.msra.mxu0 %v374
      %v376 = vand.u32 %v315, 4294901760
      %v377 = vsub.f32 %v315, %v376
      %v378 = vand.u32 %v377, 4294901760
      %v379 = vsub.f32 %v377, %v378
      %v380 = vand.u32 %v379, 4294901760
      %381 = vmatpush.msra.mxu0 %v380
      %v382 = vand.u32 %v313, 4294901760
      %v383 = vsub.f32 %v313, %v382
      %v384 = vand.u32 %v383, 4294901760
      %v385 = vsub.f32 %v383, %v384
      %v386 = vand.u32 %v385, 4294901760
      %387 = vmatpush.msra.mxu0 %v386
      %v388 = vand.u32 %v311, 4294901760
      %v389 = vsub.f32 %v311, %v388
      %v390 = vand.u32 %v389, 4294901760
      %v391 = vsub.f32 %v389, %v390
      %v392 = vand.u32 %v391, 4294901760
      %393 = vmatpush.msra.mxu0 %v392
      %v394 = vand.u32 %v309, 4294901760
      %v395 = vsub.f32 %v309, %v394
      %v396 = vand.u32 %v395, 4294901760
      %v397 = vsub.f32 %v395, %v396
      %v398 = vand.u32 %v397, 4294901760
      %399 = vmatpush.msra.mxu0 %v398
      %v400 = vand.u32 %v307, 4294901760
      %v401 = vsub.f32 %v307, %v400
      %v402 = vand.u32 %v401, 4294901760
      %v403 = vsub.f32 %v401, %v402
      %v404 = vand.u32 %v403, 4294901760
      %405 = vmatpush.msra.mxu0 %v404
      %v406 = vand.u32 %v305, 4294901760
      %v407 = vsub.f32 %v305, %v406
      %v408 = vand.u32 %v407, 4294901760
      %v409 = vsub.f32 %v407, %v408
      %v410 = vand.u32 %v409, 4294901760
      %411 = vmatpush.msra.mxu0 %v410
      %v412 = vand.u32 %v303, 4294901760
      %v413 = vsub.f32 %v303, %v412
      %v414 = vand.u32 %v413, 4294901760
      %v415 = vsub.f32 %v413, %v414
      %v416 = vand.u32 %v415, 4294901760
      %417 = vmatpush.msra.mxu0 %v416
      %v418 = vand.u32 %v301, 4294901760
      %v419 = vsub.f32 %v301, %v418
      %v420 = vand.u32 %v419, 4294901760
      %v421 = vsub.f32 %v419, %v420
      %v422 = vand.u32 %v421, 4294901760
      %423 = vmatpush.msra.mxu0 %v422
      %v424 = vand.u32 %v299, 4294901760
      %v425 = vsub.f32 %v299, %v424
      %v426 = vand.u32 %v425, 4294901760
      %v427 = vsub.f32 %v425, %v426
      %v428 = vand.u32 %v427, 4294901760
      %429 = vmatpush.msra.mxu0 %v428
      %v430 = vand.u32 %v297, 4294901760
      %v431 = vsub.f32 %v297, %v430
      %v432 = vand.u32 %v431, 4294901760
      %v433 = vsub.f32 %v431, %v432
      %v434 = vand.u32 %v433, 4294901760
      %435 = vmatpush.msra.mxu0 %v434
      %v436 = vand.u32 %v295, 4294901760
      %v437 = vsub.f32 %v295, %v436
      %v438 = vand.u32 %v437, 4294901760
      %v439 = vsub.f32 %v437, %v438
      %v440 = vand.u32 %v439, 4294901760
      %441 = vmatpush.msra.mxu0 %v440
      %v442 = vand.u32 %v293, 4294901760
      %v443 = vsub.f32 %v293, %v442
      %v444 = vand.u32 %v443, 4294901760
      %v445 = vsub.f32 %v443, %v444
      %v446 = vand.u32 %v445, 4294901760
      %447 = vmatpush.msra.mxu0 %v446
      %v448 = vand.u32 %v291, 4294901760
      %v449 = vsub.f32 %v291, %v448
      %v450 = vand.u32 %v449, 4294901760
      %v451 = vsub.f32 %v449, %v450
      %v452 = vand.u32 %v451, 4294901760
      %453 = vmatpush.msra.mxu0 %v452
      %v454 = vand.u32 %v289, 4294901760
      %v455 = vsub.f32 %v289, %v454
      %v456 = vand.u32 %v455, 4294901760
      %v457 = vsub.f32 %v455, %v456
      %v458 = vand.u32 %v457, 4294901760
      %459 = vmatpush.msra.mxu0 %v458
      %v460 = vand.u32 %v287, 4294901760
      %v461 = vsub.f32 %v287, %v460
      %v462 = vand.u32 %v461, 4294901760
      %v463 = vsub.f32 %v461, %v462
      %v464 = vand.u32 %v463, 4294901760
      %465 = vmatpush.msra.mxu0 %v464
      %v466 = vand.u32 %v319, 4294901760
      %467 = vmatmul.f32.gmra.mxu0 %v466
      %v468 = vpop.f32.mrf.mxu0
      %v469 = vadd.f32 %v360, %v468
      %v470 = vand.u32 %v320, 4294901760
      %471 = vmatmul.f32.gmra.mxu0 %v470
      %v472 = vpop.f32.mrf.mxu0
      %v473 = vadd.f32 %v368, %v472
      %474 = vdwg.mxu0
      %v475 = vand.u32 %v317, 4294901760
      %v476 = vsub.f32 %v317, %v475
      %477 = vmatpush.msra.mxu0 %v476
      %v478 = vand.u32 %v315, 4294901760
      %v479 = vsub.f32 %v315, %v478
      %480 = vmatpush.msra.mxu0 %v479
      %v481 = vand.u32 %v313, 4294901760
      %v482 = vsub.f32 %v313, %v481
      %483 = vmatpush.msra.mxu0 %v482
      %v484 = vand.u32 %v311, 4294901760
      %v485 = vsub.f32 %v311, %v484
      %486 = vmatpush.msra.mxu0 %v485
      %v487 = vand.u32 %v309, 4294901760
      %v488 = vsub.f32 %v309, %v487
      %489 = vmatpush.msra.mxu0 %v488
      %v490 = vand.u32 %v307, 4294901760
      %v491 = vsub.f32 %v307, %v490
      %492 = vmatpush.msra.mxu0 %v491
      %v493 = vand.u32 %v305, 4294901760
      %v494 = vsub.f32 %v305, %v493
      %495 = vmatpush.msra.mxu0 %v494
      %v496 = vand.u32 %v303, 4294901760
      %v497 = vsub.f32 %v303, %v496
      %498 = vmatpush.msra.mxu0 %v497
      %v499 = vand.u32 %v301, 4294901760
      %v500 = vsub.f32 %v301, %v499
      %501 = vmatpush.msra.mxu0 %v500
      %v502 = vand.u32 %v299, 4294901760
      %v503 = vsub.f32 %v299, %v502
      %504 = vmatpush.msra.mxu0 %v503
      %v505 = vand.u32 %v297, 4294901760
      %v506 = vsub.f32 %v297, %v505
      %507 = vmatpush.msra.mxu0 %v506
      %v508 = vand.u32 %v295, 4294901760
      %v509 = vsub.f32 %v295, %v508
      %510 = vmatpush.msra.mxu0 %v509
      %v511 = vand.u32 %v293, 4294901760
      %v512 = vsub.f32 %v293, %v511
      %513 = vmatpush.msra.mxu0 %v512
      %v514 = vand.u32 %v291, 4294901760
      %v515 = vsub.f32 %v291, %v514
      %516 = vmatpush.msra.mxu0 %v515
      %v517 = vand.u32 %v289, 4294901760
      %v518 = vsub.f32 %v289, %v517
      %519 = vmatpush.msra.mxu0 %v518
      %v520 = vand.u32 %v287, 4294901760
      %v521 = vsub.f32 %v287, %v520
      %522 = vmatpush.msra.mxu0 %v521
      %v523 = vand.u32 %v319, 4294901760
      %v524 = vsub.f32 %v319, %v523
      %525 = vmatmul.f32.gmra.mxu0 %v524
      %v526 = vpop.f32.mrf.mxu0
      %v527 = vadd.f32 %v469, %v526
      %v528 = vand.u32 %v320, 4294901760
      %v529 = vsub.f32 %v320, %v528
      %530 = vmatmul.f32.gmra.mxu0 %v529
      %v531 = vpop.f32.mrf.mxu0
      %v532 = vadd.f32 %v473, %v531
      %533 = vdwg.mxu0
      %v534 = vand.u32 %v317, 4294901760
      %535 = vmatpush.msra.mxu0 %v534
      %v536 = vand.u32 %v315, 4294901760
      %537 = vmatpush.msra.mxu0 %v536
      %v538 = vand.u32 %v313, 4294901760
      %539 = vmatpush.msra.mxu0 %v538
      %v540 = vand.u32 %v311, 4294901760
      %541 = vmatpush.msra.mxu0 %v540
      %v542 = vand.u32 %v309, 4294901760
      %543 = vmatpush.msra.mxu0 %v542
      %v544 = vand.u32 %v307, 4294901760
      %545 = vmatpush.msra.mxu0 %v544
      %v546 = vand.u32 %v305, 4294901760
      %547 = vmatpush.msra.mxu0 %v546
      %v548 = vand.u32 %v303, 4294901760
      %549 = vmatpush.msra.mxu0 %v548
      %v550 = vand.u32 %v301, 4294901760
      %551 = vmatpush.msra.mxu0 %v550
      %v552 = vand.u32 %v299, 4294901760
      %553 = vmatpush.msra.mxu0 %v552
      %v554 = vand.u32 %v297, 4294901760
      %555 = vmatpush.msra.mxu0 %v554
      %v556 = vand.u32 %v295, 4294901760
      %557 = vmatpush.msra.mxu0 %v556
      %v558 = vand.u32 %v293, 4294901760
      %559 = vmatpush.msra.mxu0 %v558
      %v560 = vand.u32 %v291, 4294901760
      %561 = vmatpush.msra.mxu0 %v560
      %v562 = vand.u32 %v289, 4294901760
      %563 = vmatpush.msra.mxu0 %v562
      %v564 = vand.u32 %v287, 4294901760
      %565 = vmatpush.msra.mxu0 %v564
      %v566 = vand.u32 %v319, 4294901760
      %v567 = vsub.f32 %v319, %v566
      %v568 = vand.u32 %v567, 4294901760
      %569 = vmatmul.f32.gmra.mxu0 %v568
      %v570 = vpop.f32.mrf.mxu0
      %v571 = vadd.f32 %v527, %v570
      %v572 = vand.u32 %v320, 4294901760
      %v573 = vsub.f32 %v320, %v572
      %v574 = vand.u32 %v573, 4294901760
      %575 = vmatmul.f32.gmra.mxu0 %v574
      %v576 = vpop.f32.mrf.mxu0
      %v577 = vadd.f32 %v532, %v576
      %578 = vdwg.mxu0
      %v579 = vand.u32 %v317, 4294901760
      %v580 = vsub.f32 %v317, %v579
      %v581 = vand.u32 %v580, 4294901760
      %582 = vmatpush.msra.mxu0 %v581
      %v583 = vand.u32 %v315, 4294901760
      %v584 = vsub.f32 %v315, %v583
      %v585 = vand.u32 %v584, 4294901760
      %586 = vmatpush.msra.mxu0 %v585
      %v587 = vand.u32 %v313, 4294901760
      %v588 = vsub.f32 %v313, %v587
      %v589 = vand.u32 %v588, 4294901760
      %590 = vmatpush.msra.mxu0 %v589
      %v591 = vand.u32 %v311, 4294901760
      %v592 = vsub.f32 %v311, %v591
      %v593 = vand.u32 %v592, 4294901760
      %594 = vmatpush.msra.mxu0 %v593
      %v595 = vand.u32 %v309, 4294901760
      %v596 = vsub.f32 %v309, %v595
      %v597 = vand.u32 %v596, 4294901760
      %598 = vmatpush.msra.mxu0 %v597
      %v599 = vand.u32 %v307, 4294901760
      %v600 = vsub.f32 %v307, %v599
      %v601 = vand.u32 %v600, 4294901760
      %602 = vmatpush.msra.mxu0 %v601
      %v603 = vand.u32 %v305, 4294901760
      %v604 = vsub.f32 %v305, %v603
      %v605 = vand.u32 %v604, 4294901760
      %606 = vmatpush.msra.mxu0 %v605
      %v607 = vand.u32 %v303, 4294901760
      %v608 = vsub.f32 %v303, %v607
      %v609 = vand.u32 %v608, 4294901760
      %610 = vmatpush.msra.mxu0 %v609
      %v611 = vand.u32 %v301, 4294901760
      %v612 = vsub.f32 %v301, %v611
      %v613 = vand.u32 %v612, 4294901760
      %614 = vmatpush.msra.mxu0 %v613
      %v615 = vand.u32 %v299, 4294901760
      %v616 = vsub.f32 %v299, %v615
      %v617 = vand.u32 %v616, 4294901760
      %618 = vmatpush.msra.mxu0 %v617
      %v619 = vand.u32 %v297, 4294901760
      %v620 = vsub.f32 %v297, %v619
      %v621 = vand.u32 %v620, 4294901760
      %622 = vmatpush.msra.mxu0 %v621
      %v623 = vand.u32 %v295, 4294901760
      %v624 = vsub.f32 %v295, %v623
      %v625 = vand.u32 %v624, 4294901760
      %626 = vmatpush.msra.mxu0 %v625
      %v627 = vand.u32 %v293, 4294901760
      %v628 = vsub.f32 %v293, %v627
      %v629 = vand.u32 %v628, 4294901760
      %630 = vmatpush.msra.mxu0 %v629
      %v631 = vand.u32 %v291, 4294901760
      %v632 = vsub.f32 %v291, %v631
      %v633 = vand.u32 %v632, 4294901760
      %634 = vmatpush.msra.mxu0 %v633
      %v635 = vand.u32 %v289, 4294901760
      %v636 = vsub.f32 %v289, %v635
      %v637 = vand.u32 %v636, 4294901760
      %638 = vmatpush.msra.mxu0 %v637
      %v639 = vand.u32 %v287, 4294901760
      %v640 = vsub.f32 %v287, %v639
      %v641 = vand.u32 %v640, 4294901760
      %642 = vmatpush.msra.mxu0 %v641
      %v643 = vand.u32 %v319, 4294901760
      %644 = vmatmul.f32.gmra.mxu0 %v643
      %v645 = vpop.f32.mrf.mxu0
      %v646 = vadd.f32 %v571, %v645
      %v647 = vand.u32 %v320, 4294901760
      %648 = vmatmul.f32.gmra.mxu0 %v647
      %v649 = vpop.f32.mrf.mxu0
      %v650 = vadd.f32 %v577, %v649
      %651 = vdwg.mxu0
      %v652 = vand.u32 %v317, 4294901760
      %653 = vmatpush.msra.mxu0 %v652
      %v654 = vand.u32 %v315, 4294901760
      %655 = vmatpush.msra.mxu0 %v654
      %v656 = vand.u32 %v313, 4294901760
      %657 = vmatpush.msra.mxu0 %v656
      %v658 = vand.u32 %v311, 4294901760
      %659 = vmatpush.msra.mxu0 %v658
      %v660 = vand.u32 %v309, 4294901760
      %661 = vmatpush.msra.mxu0 %v660
      %v662 = vand.u32 %v307, 4294901760
      %663 = vmatpush.msra.mxu0 %v662
      %v664 = vand.u32 %v305, 4294901760
      %665 = vmatpush.msra.mxu0 %v664
      %v666 = vand.u32 %v303, 4294901760
      %667 = vmatpush.msra.mxu0 %v666
      %v668 = vand.u32 %v301, 4294901760
      %669 = vmatpush.msra.mxu0 %v668
      %v670 = vand.u32 %v299, 4294901760
      %671 = vmatpush.msra.mxu0 %v670
      %v672 = vand.u32 %v297, 4294901760
      %673 = vmatpush.msra.mxu0 %v672
      %v674 = vand.u32 %v295, 4294901760
      %675 = vmatpush.msra.mxu0 %v674
      %v676 = vand.u32 %v293, 4294901760
      %677 = vmatpush.msra.mxu0 %v676
      %v678 = vand.u32 %v291, 4294901760
      %679 = vmatpush.msra.mxu0 %v678
      %v680 = vand.u32 %v289, 4294901760
      %681 = vmatpush.msra.mxu0 %v680
      %v682 = vand.u32 %v287, 4294901760
      %683 = vmatpush.msra.mxu0 %v682
      %v684 = vand.u32 %v319, 4294901760
      %685 = vmatmul.f32.gmra.mxu0 %v684
      %v686 = vpop.f32.mrf.mxu0
      %v687 = vadd.f32 %v646, %v686
      %v688 = vand.u32 %v320, 4294901760
      %689 = vmatmul.f32.gmra.mxu0 %v688
      %v690 = vpop.f32.mrf.mxu0
      %v691 = vadd.f32 %v650, %v690
      %692 = vdwg.mxu0
      %v693 = vand.u32 %v318, 4294901760
      %694 = vmatpush.msra.mxu0 %v693
      %v695 = vand.u32 %v316, 4294901760
      %696 = vmatpush.msra.mxu0 %v695
      %v697 = vand.u32 %v314, 4294901760
      %698 = vmatpush.msra.mxu0 %v697
      %v699 = vand.u32 %v312, 4294901760
      %700 = vmatpush.msra.mxu0 %v699
      %v701 = vand.u32 %v310, 4294901760
      %702 = vmatpush.msra.mxu0 %v701
      %v703 = vand.u32 %v308, 4294901760
      %704 = vmatpush.msra.mxu0 %v703
      %v705 = vand.u32 %v306, 4294901760
      %706 = vmatpush.msra.mxu0 %v705
      %v707 = vand.u32 %v304, 4294901760
      %708 = vmatpush.msra.mxu0 %v707
      %v709 = vand.u32 %v302, 4294901760
      %710 = vmatpush.msra.mxu0 %v709
      %v711 = vand.u32 %v300, 4294901760
      %712 = vmatpush.msra.mxu0 %v711
      %v713 = vand.u32 %v298, 4294901760
      %714 = vmatpush.msra.mxu0 %v713
      %v715 = vand.u32 %v296, 4294901760
      %716 = vmatpush.msra.mxu0 %v715
      %v717 = vand.u32 %v294, 4294901760
      %718 = vmatpush.msra.mxu0 %v717
      %v719 = vand.u32 %v292, 4294901760
      %720 = vmatpush.msra.mxu0 %v719
      %v721 = vand.u32 %v290, 4294901760
      %722 = vmatpush.msra.mxu0 %v721
      %v723 = vand.u32 %v288, 4294901760
      %724 = vmatpush.msra.mxu0 %v723
      %v725 = vand.u32 %v319, 4294901760
      %v726 = vsub.f32 %v319, %v725
      %v727 = vand.u32 %v726, 4294901760
      %v728 = vsub.f32 %v726, %v727
      %v729 = vand.u32 %v728, 4294901760
      %730 = vmatmul.f32.gmra.mxu0 %v729
      %v731 = vpop.f32.mrf.mxu0
      %v732 = vadd.f32 0.0, %v731
      %v733 = vand.u32 %v320, 4294901760
      %v734 = vsub.f32 %v320, %v733
      %v735 = vand.u32 %v734, 4294901760
      %v736 = vsub.f32 %v734, %v735
      %v737 = vand.u32 %v736, 4294901760
      %738 = vmatmul.f32.gmra.mxu0 %v737
      %v739 = vpop.f32.mrf.mxu0
      %v740 = vadd.f32 0.0, %v739
      %741 = vdwg.mxu0
      %v742 = vand.u32 %v318, 4294901760
      %v743 = vsub.f32 %v318, %v742
      %v744 = vand.u32 %v743, 4294901760
      %v745 = vsub.f32 %v743, %v744
      %v746 = vand.u32 %v745, 4294901760
      %747 = vmatpush.msra.mxu0 %v746
      %v748 = vand.u32 %v316, 4294901760
      %v749 = vsub.f32 %v316, %v748
      %v750 = vand.u32 %v749, 4294901760
      %v751 = vsub.f32 %v749, %v750
      %v752 = vand.u32 %v751, 4294901760
      %753 = vmatpush.msra.mxu0 %v752
      %v754 = vand.u32 %v314, 4294901760
      %v755 = vsub.f32 %v314, %v754
      %v756 = vand.u32 %v755, 4294901760
      %v757 = vsub.f32 %v755, %v756
      %v758 = vand.u32 %v757, 4294901760
      %759 = vmatpush.msra.mxu0 %v758
      %v760 = vand.u32 %v312, 4294901760
      %v761 = vsub.f32 %v312, %v760
      %v762 = vand.u32 %v761, 4294901760
      %v763 = vsub.f32 %v761, %v762
      %v764 = vand.u32 %v763, 4294901760
      %765 = vmatpush.msra.mxu0 %v764
      %v766 = vand.u32 %v310, 4294901760
      %v767 = vsub.f32 %v310, %v766
      %v768 = vand.u32 %v767, 4294901760
      %v769 = vsub.f32 %v767, %v768
      %v770 = vand.u32 %v769, 4294901760
      %771 = vmatpush.msra.mxu0 %v770
      %v772 = vand.u32 %v308, 4294901760
      %v773 = vsub.f32 %v308, %v772
      %v774 = vand.u32 %v773, 4294901760
      %v775 = vsub.f32 %v773, %v774
      %v776 = vand.u32 %v775, 4294901760
      %777 = vmatpush.msra.mxu0 %v776
      %v778 = vand.u32 %v306, 4294901760
      %v779 = vsub.f32 %v306, %v778
      %v780 = vand.u32 %v779, 4294901760
      %v781 = vsub.f32 %v779, %v780
      %v782 = vand.u32 %v781, 4294901760
      %783 = vmatpush.msra.mxu0 %v782
      %v784 = vand.u32 %v304, 4294901760
      %v785 = vsub.f32 %v304, %v784
      %v786 = vand.u32 %v785, 4294901760
      %v787 = vsub.f32 %v785, %v786
      %v788 = vand.u32 %v787, 4294901760
      %789 = vmatpush.msra.mxu0 %v788
      %v790 = vand.u32 %v302, 4294901760
      %v791 = vsub.f32 %v302, %v790
      %v792 = vand.u32 %v791, 4294901760
      %v793 = vsub.f32 %v791, %v792
      %v794 = vand.u32 %v793, 4294901760
      %795 = vmatpush.msra.mxu0 %v794
      %v796 = vand.u32 %v300, 4294901760
      %v797 = vsub.f32 %v300, %v796
      %v798 = vand.u32 %v797, 4294901760
      %v799 = vsub.f32 %v797, %v798
      %v800 = vand.u32 %v799, 4294901760
      %801 = vmatpush.msra.mxu0 %v800
      %v802 = vand.u32 %v298, 4294901760
      %v803 = vsub.f32 %v298, %v802
      %v804 = vand.u32 %v803, 4294901760
      %v805 = vsub.f32 %v803, %v804
      %v806 = vand.u32 %v805, 4294901760
      %807 = vmatpush.msra.mxu0 %v806
      %v808 = vand.u32 %v296, 4294901760
      %v809 = vsub.f32 %v296, %v808
      %v810 = vand.u32 %v809, 4294901760
      %v811 = vsub.f32 %v809, %v810
      %v812 = vand.u32 %v811, 4294901760
      %813 = vmatpush.msra.mxu0 %v812
      %v814 = vand.u32 %v294, 4294901760
      %v815 = vsub.f32 %v294, %v814
      %v816 = vand.u32 %v815, 4294901760
      %v817 = vsub.f32 %v815, %v816
      %v818 = vand.u32 %v817, 4294901760
      %819 = vmatpush.msra.mxu0 %v818
      %v820 = vand.u32 %v292, 4294901760
      %v821 = vsub.f32 %v292, %v820
      %v822 = vand.u32 %v821, 4294901760
      %v823 = vsub.f32 %v821, %v822
      %v824 = vand.u32 %v823, 4294901760
      %825 = vmatpush.msra.mxu0 %v824
      %v826 = vand.u32 %v290, 4294901760
      %v827 = vsub.f32 %v290, %v826
      %v828 = vand.u32 %v827, 4294901760
      %v829 = vsub.f32 %v827, %v828
      %v830 = vand.u32 %v829, 4294901760
      %831 = vmatpush.msra.mxu0 %v830
      %v832 = vand.u32 %v288, 4294901760
      %v833 = vsub.f32 %v288, %v832
      %v834 = vand.u32 %v833, 4294901760
      %v835 = vsub.f32 %v833, %v834
      %v836 = vand.u32 %v835, 4294901760
      %837 = vmatpush.msra.mxu0 %v836
      %v838 = vand.u32 %v319, 4294901760
      %839 = vmatmul.f32.gmra.mxu0 %v838
      %v840 = vpop.f32.mrf.mxu0
      %v841 = vadd.f32 %v732, %v840
      %v842 = vand.u32 %v320, 4294901760
      %843 = vmatmul.f32.gmra.mxu0 %v842
      %v844 = vpop.f32.mrf.mxu0
      %v845 = vadd.f32 %v740, %v844
      %846 = vdwg.mxu0
      %v847 = vand.u32 %v318, 4294901760
      %v848 = vsub.f32 %v318, %v847
      %849 = vmatpush.msra.mxu0 %v848
      %v850 = vand.u32 %v316, 4294901760
      %v851 = vsub.f32 %v316, %v850
      %852 = vmatpush.msra.mxu0 %v851
      %v853 = vand.u32 %v314, 4294901760
      %v854 = vsub.f32 %v314, %v853
      %855 = vmatpush.msra.mxu0 %v854
      %v856 = vand.u32 %v312, 4294901760
      %v857 = vsub.f32 %v312, %v856
      %858 = vmatpush.msra.mxu0 %v857
      %v859 = vand.u32 %v310, 4294901760
      %v860 = vsub.f32 %v310, %v859
      %861 = vmatpush.msra.mxu0 %v860
      %v862 = vand.u32 %v308, 4294901760
      %v863 = vsub.f32 %v308, %v862
      %864 = vmatpush.msra.mxu0 %v863
      %v865 = vand.u32 %v306, 4294901760
      %v866 = vsub.f32 %v306, %v865
      %867 = vmatpush.msra.mxu0 %v866
      %v868 = vand.u32 %v304, 4294901760
      %v869 = vsub.f32 %v304, %v868
      %870 = vmatpush.msra.mxu0 %v869
      %v871 = vand.u32 %v302, 4294901760
      %v872 = vsub.f32 %v302, %v871
      %873 = vmatpush.msra.mxu0 %v872
      %v874 = vand.u32 %v300, 4294901760
      %v875 = vsub.f32 %v300, %v874
      %876 = vmatpush.msra.mxu0 %v875
      %v877 = vand.u32 %v298, 4294901760
      %v878 = vsub.f32 %v298, %v877
      %879 = vmatpush.msra.mxu0 %v878
      %v880 = vand.u32 %v296, 4294901760
      %v881 = vsub.f32 %v296, %v880
      %882 = vmatpush.msra.mxu0 %v881
      %v883 = vand.u32 %v294, 4294901760
      %v884 = vsub.f32 %v294, %v883
      %885 = vmatpush.msra.mxu0 %v884
      %v886 = vand.u32 %v292, 4294901760
      %v887 = vsub.f32 %v292, %v886
      %888 = vmatpush.msra.mxu0 %v887
      %v889 = vand.u32 %v290, 4294901760
      %v890 = vsub.f32 %v290, %v889
      %891 = vmatpush.msra.mxu0 %v890
      %v892 = vand.u32 %v288, 4294901760
      %v893 = vsub.f32 %v288, %v892
      %894 = vmatpush.msra.mxu0 %v893
      %v895 = vand.u32 %v319, 4294901760
      %v896 = vsub.f32 %v319, %v895
      %897 = vmatmul.f32.gmra.mxu0 %v896
      %v898 = vpop.f32.mrf.mxu0
      %v899 = vadd.f32 %v841, %v898
      %v900 = vand.u32 %v320, 4294901760
      %v901 = vsub.f32 %v320, %v900
      %902 = vmatmul.f32.gmra.mxu0 %v901
      %v903 = vpop.f32.mrf.mxu0
      %v904 = vadd.f32 %v845, %v903
      %905 = vdwg.mxu0
      %v906 = vand.u32 %v318, 4294901760
      %907 = vmatpush.msra.mxu0 %v906
      %v908 = vand.u32 %v316, 4294901760
      %909 = vmatpush.msra.mxu0 %v908
      %v910 = vand.u32 %v314, 4294901760
      %911 = vmatpush.msra.mxu0 %v910
      %v912 = vand.u32 %v312, 4294901760
      %913 = vmatpush.msra.mxu0 %v912
      %v914 = vand.u32 %v310, 4294901760
      %915 = vmatpush.msra.mxu0 %v914
      %v916 = vand.u32 %v308, 4294901760
      %917 = vmatpush.msra.mxu0 %v916
      %v918 = vand.u32 %v306, 4294901760
      %919 = vmatpush.msra.mxu0 %v918
      %v920 = vand.u32 %v304, 4294901760
      %921 = vmatpush.msra.mxu0 %v920
      %v922 = vand.u32 %v302, 4294901760
      %923 = vmatpush.msra.mxu0 %v922
      %v924 = vand.u32 %v300, 4294901760
      %925 = vmatpush.msra.mxu0 %v924
      %v926 = vand.u32 %v298, 4294901760
      %927 = vmatpush.msra.mxu0 %v926
      %v928 = vand.u32 %v296, 4294901760
      %929 = vmatpush.msra.mxu0 %v928
      %v930 = vand.u32 %v294, 4294901760
      %931 = vmatpush.msra.mxu0 %v930
      %v932 = vand.u32 %v292, 4294901760
      %933 = vmatpush.msra.mxu0 %v932
      %v934 = vand.u32 %v290, 4294901760
      %935 = vmatpush.msra.mxu0 %v934
      %v936 = vand.u32 %v288, 4294901760
      %937 = vmatpush.msra.mxu0 %v936
      %v938 = vand.u32 %v319, 4294901760
      %v939 = vsub.f32 %v319, %v938
      %v940 = vand.u32 %v939, 4294901760
      %941 = vmatmul.f32.gmra.mxu0 %v940
      %v942 = vpop.f32.mrf.mxu0
      %v943 = vadd.f32 %v899, %v942
      %v944 = vand.u32 %v320, 4294901760
      %v945 = vsub.f32 %v320, %v944
      %v946 = vand.u32 %v945, 4294901760
      %947 = vmatmul.f32.gmra.mxu0 %v946
      %v948 = vpop.f32.mrf.mxu0
      %v949 = vadd.f32 %v904, %v948
      %950 = vdwg.mxu0
      %v951 = vand.u32 %v318, 4294901760
      %v952 = vsub.f32 %v318, %v951
      %v953 = vand.u32 %v952, 4294901760
      %954 = vmatpush.msra.mxu0 %v953
      %v955 = vand.u32 %v316, 4294901760
      %v956 = vsub.f32 %v316, %v955
      %v957 = vand.u32 %v956, 4294901760
      %958 = vmatpush.msra.mxu0 %v957
      %v959 = vand.u32 %v314, 4294901760
      %v960 = vsub.f32 %v314, %v959
      %v961 = vand.u32 %v960, 4294901760
      %962 = vmatpush.msra.mxu0 %v961
      %v963 = vand.u32 %v312, 4294901760
      %v964 = vsub.f32 %v312, %v963
      %v965 = vand.u32 %v964, 4294901760
      %966 = vmatpush.msra.mxu0 %v965
      %v967 = vand.u32 %v310, 4294901760
      %v968 = vsub.f32 %v310, %v967
      %v969 = vand.u32 %v968, 4294901760
      %970 = vmatpush.msra.mxu0 %v969
      %v971 = vand.u32 %v308, 4294901760
      %v972 = vsub.f32 %v308, %v971
      %v973 = vand.u32 %v972, 4294901760
      %974 = vmatpush.msra.mxu0 %v973
      %v975 = vand.u32 %v306, 4294901760
      %v976 = vsub.f32 %v306, %v975
      %v977 = vand.u32 %v976, 4294901760
      %978 = vmatpush.msra.mxu0 %v977
      %v979 = vand.u32 %v304, 4294901760
      %v980 = vsub.f32 %v304, %v979
      %v981 = vand.u32 %v980, 4294901760
      %982 = vmatpush.msra.mxu0 %v981
      %v983 = vand.u32 %v302, 4294901760
      %v984 = vsub.f32 %v302, %v983
      %v985 = vand.u32 %v984, 4294901760
      %986 = vmatpush.msra.mxu0 %v985
      %v987 = vand.u32 %v300, 4294901760
      %v988 = vsub.f32 %v300, %v987
      %v989 = vand.u32 %v988, 4294901760
      %990 = vmatpush.msra.mxu0 %v989
      %v991 = vand.u32 %v298, 4294901760
      %v992 = vsub.f32 %v298, %v991
      %v993 = vand.u32 %v992, 4294901760
      %994 = vmatpush.msra.mxu0 %v993
      %v995 = vand.u32 %v296, 4294901760
      %v996 = vsub.f32 %v296, %v995
      %v997 = vand.u32 %v996, 4294901760
      %998 = vmatpush.msra.mxu0 %v997
      %v999 = vand.u32 %v294, 4294901760
      %v1000 = vsub.f32 %v294, %v999
      %v1001 = vand.u32 %v1000, 4294901760
      %1002 = vmatpush.msra.mxu0 %v1001
      %v1003 = vand.u32 %v292, 4294901760
      %v1004 = vsub.f32 %v292, %v1003
      %v1005 = vand.u32 %v1004, 4294901760
      %1006 = vmatpush.msra.mxu0 %v1005
      %v1007 = vand.u32 %v290, 4294901760
      %v1008 = vsub.f32 %v290, %v1007
      %v1009 = vand.u32 %v1008, 4294901760
      %1010 = vmatpush.msra.mxu0 %v1009
      %v1011 = vand.u32 %v288, 4294901760
      %v1012 = vsub.f32 %v288, %v1011
      %v1013 = vand.u32 %v1012, 4294901760
      %1014 = vmatpush.msra.mxu0 %v1013
      %v1015 = vand.u32 %v319, 4294901760
      %1016 = vmatmul.f32.gmra.mxu0 %v1015
      %v1017 = vpop.f32.mrf.mxu0
      %v1018 = vadd.f32 %v943, %v1017
      %v1019 = vand.u32 %v320, 4294901760
      %1020 = vmatmul.f32.gmra.mxu0 %v1019
      %v1021 = vpop.f32.mrf.mxu0
      %v1022 = vadd.f32 %v949, %v1021
      %1023 = vdwg.mxu0
      %v1024 = vand.u32 %v318, 4294901760
      %1025 = vmatpush.msra.mxu0 %v1024
      %v1026 = vand.u32 %v316, 4294901760
      %1027 = vmatpush.msra.mxu0 %v1026
      %v1028 = vand.u32 %v314, 4294901760
      %1029 = vmatpush.msra.mxu0 %v1028
      %v1030 = vand.u32 %v312, 4294901760
      %1031 = vmatpush.msra.mxu0 %v1030
      %v1032 = vand.u32 %v310, 4294901760
      %1033 = vmatpush.msra.mxu0 %v1032
      %v1034 = vand.u32 %v308, 4294901760
      %1035 = vmatpush.msra.mxu0 %v1034
      %v1036 = vand.u32 %v306, 4294901760
      %1037 = vmatpush.msra.mxu0 %v1036
      %v1038 = vand.u32 %v304, 4294901760
      %1039 = vmatpush.msra.mxu0 %v1038
      %v1040 = vand.u32 %v302, 4294901760
      %1041 = vmatpush.msra.mxu0 %v1040
      %v1042 = vand.u32 %v300, 4294901760
      %1043 = vmatpush.msra.mxu0 %v1042
      %v1044 = vand.u32 %v298, 4294901760
      %1045 = vmatpush.msra.mxu0 %v1044
      %v1046 = vand.u32 %v296, 4294901760
      %1047 = vmatpush.msra.mxu0 %v1046
      %v1048 = vand.u32 %v294, 4294901760
      %1049 = vmatpush.msra.mxu0 %v1048
      %v1050 = vand.u32 %v292, 4294901760
      %1051 = vmatpush.msra.mxu0 %v1050
      %v1052 = vand.u32 %v290, 4294901760
      %1053 = vmatpush.msra.mxu0 %v1052
      %v1054 = vand.u32 %v288, 4294901760
      %1055 = vmatpush.msra.mxu0 %v1054
      %v1056 = vand.u32 %v319, 4294901760
      %1057 = vmatmul.f32.gmra.mxu0 %v1056
      %v1058 = vpop.f32.mrf.mxu0
      %v1059 = vadd.f32 %v1018, %v1058
      %v1060 = vand.u32 %v320, 4294901760
      %1061 = vmatmul.f32.gmra.mxu0 %v1060
      %v1062 = vpop.f32.mrf.mxu0
      %v1063 = vadd.f32 %v1022, %v1062
      %1064 = vdwg.mxu0
      %v1065 = vld [vmem:[%s271] sm:$0xff]
      %v1066 = vld [vmem:[%s271 + $0x8] sm:$0xff]
      %v1067 = vand.u32 %v317, 4294901760
      %1068 = vmatpush.msra.mxu0 %v1067
      %v1069 = vand.u32 %v315, 4294901760
      %1070 = vmatpush.msra.mxu0 %v1069
      %v1071 = vand.u32 %v313, 4294901760
      %1072 = vmatpush.msra.mxu0 %v1071
      %v1073 = vand.u32 %v311, 4294901760
      %1074 = vmatpush.msra.mxu0 %v1073
      %v1075 = vand.u32 %v309, 4294901760
      %1076 = vmatpush.msra.mxu0 %v1075
      %v1077 = vand.u32 %v307, 4294901760
      %1078 = vmatpush.msra.mxu0 %v1077
      %v1079 = vand.u32 %v305, 4294901760
      %1080 = vmatpush.msra.mxu0 %v1079
      %v1081 = vand.u32 %v303, 4294901760
      %1082 = vmatpush.msra.mxu0 %v1081
      %v1083 = vand.u32 %v301, 4294901760
      %1084 = vmatpush.msra.mxu0 %v1083
      %v1085 = vand.u32 %v299, 4294901760
      %1086 = vmatpush.msra.mxu0 %v1085
      %v1087 = vand.u32 %v297, 4294901760
      %1088 = vmatpush.msra.mxu0 %v1087
      %v1089 = vand.u32 %v295, 4294901760
      %1090 = vmatpush.msra.mxu0 %v1089
      %v1091 = vand.u32 %v293, 4294901760
      %1092 = vmatpush.msra.mxu0 %v1091
      %v1093 = vand.u32 %v291, 4294901760
      %1094 = vmatpush.msra.mxu0 %v1093
      %v1095 = vand.u32 %v289, 4294901760
      %1096 = vmatpush.msra.mxu0 %v1095
      %v1097 = vand.u32 %v287, 4294901760
      %1098 = vmatpush.msra.mxu0 %v1097
      %v1099 = vand.u32 %v1065, 4294901760
      %v1100 = vsub.f32 %v1065, %v1099
      %v1101 = vand.u32 %v1100, 4294901760
      %v1102 = vsub.f32 %v1100, %v1101
      %v1103 = vand.u32 %v1102, 4294901760
      %1104 = vmatmul.f32.gmra.mxu0 %v1103
      %v1105 = vpop.f32.mrf.mxu0
      %v1106 = vadd.f32 0.0, %v1105
      %v1107 = vand.u32 %v1066, 4294901760
      %v1108 = vsub.f32 %v1066, %v1107
      %v1109 = vand.u32 %v1108, 4294901760
      %v1110 = vsub.f32 %v1108, %v1109
      %v1111 = vand.u32 %v1110, 4294901760
      %1112 = vmatmul.f32.gmra.mxu0 %v1111
      %v1113 = vpop.f32.mrf.mxu0
      %v1114 = vadd.f32 0.0, %v1113
      %1115 = vdwg.mxu0
      %v1116 = vand.u32 %v317, 4294901760
      %v1117 = vsub.f32 %v317, %v1116
      %v1118 = vand.u32 %v1117, 4294901760
      %v1119 = vsub.f32 %v1117, %v1118
      %v1120 = vand.u32 %v1119, 4294901760
      %1121 = vmatpush.msra.mxu0 %v1120
      %v1122 = vand.u32 %v315, 4294901760
      %v1123 = vsub.f32 %v315, %v1122
      %v1124 = vand.u32 %v1123, 4294901760
      %v1125 = vsub.f32 %v1123, %v1124
      %v1126 = vand.u32 %v1125, 4294901760
      %1127 = vmatpush.msra.mxu0 %v1126
      %v1128 = vand.u32 %v313, 4294901760
      %v1129 = vsub.f32 %v313, %v1128
      %v1130 = vand.u32 %v1129, 4294901760
      %v1131 = vsub.f32 %v1129, %v1130
      %v1132 = vand.u32 %v1131, 4294901760
      %1133 = vmatpush.msra.mxu0 %v1132
      %v1134 = vand.u32 %v311, 4294901760
      %v1135 = vsub.f32 %v311, %v1134
      %v1136 = vand.u32 %v1135, 4294901760
      %v1137 = vsub.f32 %v1135, %v1136
      %v1138 = vand.u32 %v1137, 4294901760
      %1139 = vmatpush.msra.mxu0 %v1138
      %v1140 = vand.u32 %v309, 4294901760
      %v1141 = vsub.f32 %v309, %v1140
      %v1142 = vand.u32 %v1141, 4294901760
      %v1143 = vsub.f32 %v1141, %v1142
      %v1144 = vand.u32 %v1143, 4294901760
      %1145 = vmatpush.msra.mxu0 %v1144
      %v1146 = vand.u32 %v307, 4294901760
      %v1147 = vsub.f32 %v307, %v1146
      %v1148 = vand.u32 %v1147, 4294901760
      %v1149 = vsub.f32 %v1147, %v1148
      %v1150 = vand.u32 %v1149, 4294901760
      %1151 = vmatpush.msra.mxu0 %v1150
      %v1152 = vand.u32 %v305, 4294901760
      %v1153 = vsub.f32 %v305, %v1152
      %v1154 = vand.u32 %v1153, 4294901760
      %v1155 = vsub.f32 %v1153, %v1154
      %v1156 = vand.u32 %v1155, 4294901760
      %1157 = vmatpush.msra.mxu0 %v1156
      %v1158 = vand.u32 %v303, 4294901760
      %v1159 = vsub.f32 %v303, %v1158
      %v1160 = vand.u32 %v1159, 4294901760
      %v1161 = vsub.f32 %v1159, %v1160
      %v1162 = vand.u32 %v1161, 4294901760
      %1163 = vmatpush.msra.mxu0 %v1162
      %v1164 = vand.u32 %v301, 4294901760
      %v1165 = vsub.f32 %v301, %v1164
      %v1166 = vand.u32 %v1165, 4294901760
      %v1167 = vsub.f32 %v1165, %v1166
      %v1168 = vand.u32 %v1167, 4294901760
      %1169 = vmatpush.msra.mxu0 %v1168
      %v1170 = vand.u32 %v299, 4294901760
      %v1171 = vsub.f32 %v299, %v1170
      %v1172 = vand.u32 %v1171, 4294901760
      %v1173 = vsub.f32 %v1171, %v1172
      %v1174 = vand.u32 %v1173, 4294901760
      %1175 = vmatpush.msra.mxu0 %v1174
      %v1176 = vand.u32 %v297, 4294901760
      %v1177 = vsub.f32 %v297, %v1176
      %v1178 = vand.u32 %v1177, 4294901760
      %v1179 = vsub.f32 %v1177, %v1178
      %v1180 = vand.u32 %v1179, 4294901760
      %1181 = vmatpush.msra.mxu0 %v1180
      %v1182 = vand.u32 %v295, 4294901760
      %v1183 = vsub.f32 %v295, %v1182
      %v1184 = vand.u32 %v1183, 4294901760
      %v1185 = vsub.f32 %v1183, %v1184
      %v1186 = vand.u32 %v1185, 4294901760
      %1187 = vmatpush.msra.mxu0 %v1186
      %v1188 = vand.u32 %v293, 4294901760
      %v1189 = vsub.f32 %v293, %v1188
      %v1190 = vand.u32 %v1189, 4294901760
      %v1191 = vsub.f32 %v1189, %v1190
      %v1192 = vand.u32 %v1191, 4294901760
      %1193 = vmatpush.msra.mxu0 %v1192
      %v1194 = vand.u32 %v291, 4294901760
      %v1195 = vsub.f32 %v291, %v1194
      %v1196 = vand.u32 %v1195, 4294901760
      %v1197 = vsub.f32 %v1195, %v1196
      %v1198 = vand.u32 %v1197, 4294901760
      %1199 = vmatpush.msra.mxu0 %v1198
      %v1200 = vand.u32 %v289, 4294901760
      %v1201 = vsub.f32 %v289, %v1200
      %v1202 = vand.u32 %v1201, 4294901760
      %v1203 = vsub.f32 %v1201, %v1202
      %v1204 = vand.u32 %v1203, 4294901760
      %1205 = vmatpush.msra.mxu0 %v1204
      %v1206 = vand.u32 %v287, 4294901760
      %v1207 = vsub.f32 %v287, %v1206
      %v1208 = vand.u32 %v1207, 4294901760
      %v1209 = vsub.f32 %v1207, %v1208
      %v1210 = vand.u32 %v1209, 4294901760
      %1211 = vmatpush.msra.mxu0 %v1210
      %v1212 = vand.u32 %v1065, 4294901760
      %1213 = vmatmul.f32.gmra.mxu0 %v1212
      %v1214 = vpop.f32.mrf.mxu0
      %v1215 = vadd.f32 %v1106, %v1214
      %v1216 = vand.u32 %v1066, 4294901760
      %1217 = vmatmul.f32.gmra.mxu0 %v1216
      %v1218 = vpop.f32.mrf.mxu0
      %v1219 = vadd.f32 %v1114, %v1218
      %1220 = vdwg.mxu0
      %v1221 = vand.u32 %v317, 4294901760
      %v1222 = vsub.f32 %v317, %v1221
      %1223 = vmatpush.msra.mxu0 %v1222
      %v1224 = vand.u32 %v315, 4294901760
      %v1225 = vsub.f32 %v315, %v1224
      %1226 = vmatpush.msra.mxu0 %v1225
      %v1227 = vand.u32 %v313, 4294901760
      %v1228 = vsub.f32 %v313, %v1227
      %1229 = vmatpush.msra.mxu0 %v1228
      %v1230 = vand.u32 %v311, 4294901760
      %v1231 = vsub.f32 %v311, %v1230
      %1232 = vmatpush.msra.mxu0 %v1231
      %v1233 = vand.u32 %v309, 4294901760
      %v1234 = vsub.f32 %v309, %v1233
      %1235 = vmatpush.msra.mxu0 %v1234
      %v1236 = vand.u32 %v307, 4294901760
      %v1237 = vsub.f32 %v307, %v1236
      %1238 = vmatpush.msra.mxu0 %v1237
      %v1239 = vand.u32 %v305, 4294901760
      %v1240 = vsub.f32 %v305, %v1239
      %1241 = vmatpush.msra.mxu0 %v1240
      %v1242 = vand.u32 %v303, 4294901760
      %v1243 = vsub.f32 %v303, %v1242
      %1244 = vmatpush.msra.mxu0 %v1243
      %v1245 = vand.u32 %v301, 4294901760
      %v1246 = vsub.f32 %v301, %v1245
      %1247 = vmatpush.msra.mxu0 %v1246
      %v1248 = vand.u32 %v299, 4294901760
      %v1249 = vsub.f32 %v299, %v1248
      %1250 = vmatpush.msra.mxu0 %v1249
      %v1251 = vand.u32 %v297, 4294901760
      %v1252 = vsub.f32 %v297, %v1251
      %1253 = vmatpush.msra.mxu0 %v1252
      %v1254 = vand.u32 %v295, 4294901760
      %v1255 = vsub.f32 %v295, %v1254
      %1256 = vmatpush.msra.mxu0 %v1255
      %v1257 = vand.u32 %v293, 4294901760
      %v1258 = vsub.f32 %v293, %v1257
      %1259 = vmatpush.msra.mxu0 %v1258
      %v1260 = vand.u32 %v291, 4294901760
      %v1261 = vsub.f32 %v291, %v1260
      %1262 = vmatpush.msra.mxu0 %v1261
      %v1263 = vand.u32 %v289, 4294901760
      %v1264 = vsub.f32 %v289, %v1263
      %1265 = vmatpush.msra.mxu0 %v1264
      %v1266 = vand.u32 %v287, 4294901760
      %v1267 = vsub.f32 %v287, %v1266
      %1268 = vmatpush.msra.mxu0 %v1267
      %v1269 = vand.u32 %v1065, 4294901760
      %v1270 = vsub.f32 %v1065, %v1269
      %1271 = vmatmul.f32.gmra.mxu0 %v1270
      %v1272 = vpop.f32.mrf.mxu0
      %v1273 = vadd.f32 %v1215, %v1272
      %v1274 = vand.u32 %v1066, 4294901760
      %v1275 = vsub.f32 %v1066, %v1274
      %1276 = vmatmul.f32.gmra.mxu0 %v1275
      %v1277 = vpop.f32.mrf.mxu0
      %v1278 = vadd.f32 %v1219, %v1277
      %1279 = vdwg.mxu0
      %v1280 = vand.u32 %v317, 4294901760
      %1281 = vmatpush.msra.mxu0 %v1280
      %v1282 = vand.u32 %v315, 4294901760
      %1283 = vmatpush.msra.mxu0 %v1282
      %v1284 = vand.u32 %v313, 4294901760
      %1285 = vmatpush.msra.mxu0 %v1284
      %v1286 = vand.u32 %v311, 4294901760
      %1287 = vmatpush.msra.mxu0 %v1286
      %v1288 = vand.u32 %v309, 4294901760
      %1289 = vmatpush.msra.mxu0 %v1288
      %v1290 = vand.u32 %v307, 4294901760
      %1291 = vmatpush.msra.mxu0 %v1290
      %v1292 = vand.u32 %v305, 4294901760
      %1293 = vmatpush.msra.mxu0 %v1292
      %v1294 = vand.u32 %v303, 4294901760
      %1295 = vmatpush.msra.mxu0 %v1294
      %v1296 = vand.u32 %v301, 4294901760
      %1297 = vmatpush.msra.mxu0 %v1296
      %v1298 = vand.u32 %v299, 4294901760
      %1299 = vmatpush.msra.mxu0 %v1298
      %v1300 = vand.u32 %v297, 4294901760
      %1301 = vmatpush.msra.mxu0 %v1300
      %v1302 = vand.u32 %v295, 4294901760
      %1303 = vmatpush.msra.mxu0 %v1302
      %v1304 = vand.u32 %v293, 4294901760
      %1305 = vmatpush.msra.mxu0 %v1304
      %v1306 = vand.u32 %v291, 4294901760
      %1307 = vmatpush.msra.mxu0 %v1306
      %v1308 = vand.u32 %v289, 4294901760
      %1309 = vmatpush.msra.mxu0 %v1308
      %v1310 = vand.u32 %v287, 4294901760
      %1311 = vmatpush.msra.mxu0 %v1310
      %v1312 = vand.u32 %v1065, 4294901760
      %v1313 = vsub.f32 %v1065, %v1312
      %v1314 = vand.u32 %v1313, 4294901760
      %1315 = vmatmul.f32.gmra.mxu0 %v1314
      %v1316 = vpop.f32.mrf.mxu0
      %v1317 = vadd.f32 %v1273, %v1316
      %v1318 = vand.u32 %v1066, 4294901760
      %v1319 = vsub.f32 %v1066, %v1318
      %v1320 = vand.u32 %v1319, 4294901760
      %1321 = vmatmul.f32.gmra.mxu0 %v1320
      %v1322 = vpop.f32.mrf.mxu0
      %v1323 = vadd.f32 %v1278, %v1322
      %1324 = vdwg.mxu0
      %v1325 = vand.u32 %v317, 4294901760
      %v1326 = vsub.f32 %v317, %v1325
      %v1327 = vand.u32 %v1326, 4294901760
      %1328 = vmatpush.msra.mxu0 %v1327
      %v1329 = vand.u32 %v315, 4294901760
      %v1330 = vsub.f32 %v315, %v1329
      %v1331 = vand.u32 %v1330, 4294901760
      %1332 = vmatpush.msra.mxu0 %v1331
      %v1333 = vand.u32 %v313, 4294901760
      %v1334 = vsub.f32 %v313, %v1333
      %v1335 = vand.u32 %v1334, 4294901760
      %1336 = vmatpush.msra.mxu0 %v1335
      %v1337 = vand.u32 %v311, 4294901760
      %v1338 = vsub.f32 %v311, %v1337
      %v1339 = vand.u32 %v1338, 4294901760
      %1340 = vmatpush.msra.mxu0 %v1339
      %v1341 = vand.u32 %v309, 4294901760
      %v1342 = vsub.f32 %v309, %v1341
      %v1343 = vand.u32 %v1342, 4294901760
      %1344 = vmatpush.msra.mxu0 %v1343
      %v1345 = vand.u32 %v307, 4294901760
      %v1346 = vsub.f32 %v307, %v1345
      %v1347 = vand.u32 %v1346, 4294901760
      %1348 = vmatpush.msra.mxu0 %v1347
      %v1349 = vand.u32 %v305, 4294901760
      %v1350 = vsub.f32 %v305, %v1349
      %v1351 = vand.u32 %v1350, 4294901760
      %1352 = vmatpush.msra.mxu0 %v1351
      %v1353 = vand.u32 %v303, 4294901760
      %v1354 = vsub.f32 %v303, %v1353
      %v1355 = vand.u32 %v1354, 4294901760
      %1356 = vmatpush.msra.mxu0 %v1355
      %v1357 = vand.u32 %v301, 4294901760
      %v1358 = vsub.f32 %v301, %v1357
      %v1359 = vand.u32 %v1358, 4294901760
      %1360 = vmatpush.msra.mxu0 %v1359
      %v1361 = vand.u32 %v299, 4294901760
      %v1362 = vsub.f32 %v299, %v1361
      %v1363 = vand.u32 %v1362, 4294901760
      %1364 = vmatpush.msra.mxu0 %v1363
      %v1365 = vand.u32 %v297, 4294901760
      %v1366 = vsub.f32 %v297, %v1365
      %v1367 = vand.u32 %v1366, 4294901760
      %1368 = vmatpush.msra.mxu0 %v1367
      %v1369 = vand.u32 %v295, 4294901760
      %v1370 = vsub.f32 %v295, %v1369
      %v1371 = vand.u32 %v1370, 4294901760
      %1372 = vmatpush.msra.mxu0 %v1371
      %v1373 = vand.u32 %v293, 4294901760
      %v1374 = vsub.f32 %v293, %v1373
      %v1375 = vand.u32 %v1374, 4294901760
      %1376 = vmatpush.msra.mxu0 %v1375
      %v1377 = vand.u32 %v291, 4294901760
      %v1378 = vsub.f32 %v291, %v1377
      %v1379 = vand.u32 %v1378, 4294901760
      %1380 = vmatpush.msra.mxu0 %v1379
      %v1381 = vand.u32 %v289, 4294901760
      %v1382 = vsub.f32 %v289, %v1381
      %v1383 = vand.u32 %v1382, 4294901760
      %1384 = vmatpush.msra.mxu0 %v1383
      %v1385 = vand.u32 %v287, 4294901760
      %v1386 = vsub.f32 %v287, %v1385
      %v1387 = vand.u32 %v1386, 4294901760
      %1388 = vmatpush.msra.mxu0 %v1387
      %v1389 = vand.u32 %v1065, 4294901760
      %1390 = vmatmul.f32.gmra.mxu0 %v1389
      %v1391 = vpop.f32.mrf.mxu0
      %v1392 = vadd.f32 %v1317, %v1391
      %v1393 = vand.u32 %v1066, 4294901760
      %1394 = vmatmul.f32.gmra.mxu0 %v1393
      %v1395 = vpop.f32.mrf.mxu0
      %v1396 = vadd.f32 %v1323, %v1395
      %1397 = vdwg.mxu0
      %v1398 = vand.u32 %v317, 4294901760
      %1399 = vmatpush.msra.mxu0 %v1398
      %v1400 = vand.u32 %v315, 4294901760
      %1401 = vmatpush.msra.mxu0 %v1400
      %v1402 = vand.u32 %v313, 4294901760
      %1403 = vmatpush.msra.mxu0 %v1402
      %v1404 = vand.u32 %v311, 4294901760
      %1405 = vmatpush.msra.mxu0 %v1404
      %v1406 = vand.u32 %v309, 4294901760
      %1407 = vmatpush.msra.mxu0 %v1406
      %v1408 = vand.u32 %v307, 4294901760
      %1409 = vmatpush.msra.mxu0 %v1408
      %v1410 = vand.u32 %v305, 4294901760
      %1411 = vmatpush.msra.mxu0 %v1410
      %v1412 = vand.u32 %v303, 4294901760
      %1413 = vmatpush.msra.mxu0 %v1412
      %v1414 = vand.u32 %v301, 4294901760
      %1415 = vmatpush.msra.mxu0 %v1414
      %v1416 = vand.u32 %v299, 4294901760
      %1417 = vmatpush.msra.mxu0 %v1416
      %v1418 = vand.u32 %v297, 4294901760
      %1419 = vmatpush.msra.mxu0 %v1418
      %v1420 = vand.u32 %v295, 4294901760
      %1421 = vmatpush.msra.mxu0 %v1420
      %v1422 = vand.u32 %v293, 4294901760
      %1423 = vmatpush.msra.mxu0 %v1422
      %v1424 = vand.u32 %v291, 4294901760
      %1425 = vmatpush.msra.mxu0 %v1424
      %v1426 = vand.u32 %v289, 4294901760
      %1427 = vmatpush.msra.mxu0 %v1426
      %v1428 = vand.u32 %v287, 4294901760
      %1429 = vmatpush.msra.mxu0 %v1428
      %v1430 = vand.u32 %v1065, 4294901760
      %1431 = vmatmul.f32.gmra.mxu0 %v1430
      %v1432 = vpop.f32.mrf.mxu0
      %v1433 = vadd.f32 %v1392, %v1432
      %v1434 = vand.u32 %v1066, 4294901760
      %1435 = vmatmul.f32.gmra.mxu0 %v1434
      %v1436 = vpop.f32.mrf.mxu0
      %v1437 = vadd.f32 %v1396, %v1436
      %1438 = vdwg.mxu0
      %v1439 = vand.u32 %v318, 4294901760
      %1440 = vmatpush.msra.mxu0 %v1439
      %v1441 = vand.u32 %v316, 4294901760
      %1442 = vmatpush.msra.mxu0 %v1441
      %v1443 = vand.u32 %v314, 4294901760
      %1444 = vmatpush.msra.mxu0 %v1443
      %v1445 = vand.u32 %v312, 4294901760
      %1446 = vmatpush.msra.mxu0 %v1445
      %v1447 = vand.u32 %v310, 4294901760
      %1448 = vmatpush.msra.mxu0 %v1447
      %v1449 = vand.u32 %v308, 4294901760
      %1450 = vmatpush.msra.mxu0 %v1449
      %v1451 = vand.u32 %v306, 4294901760
      %1452 = vmatpush.msra.mxu0 %v1451
      %v1453 = vand.u32 %v304, 4294901760
      %1454 = vmatpush.msra.mxu0 %v1453
      %v1455 = vand.u32 %v302, 4294901760
      %1456 = vmatpush.msra.mxu0 %v1455
      %v1457 = vand.u32 %v300, 4294901760
      %1458 = vmatpush.msra.mxu0 %v1457
      %v1459 = vand.u32 %v298, 4294901760
      %1460 = vmatpush.msra.mxu0 %v1459
      %v1461 = vand.u32 %v296, 4294901760
      %1462 = vmatpush.msra.mxu0 %v1461
      %v1463 = vand.u32 %v294, 4294901760
      %1464 = vmatpush.msra.mxu0 %v1463
      %v1465 = vand.u32 %v292, 4294901760
      %1466 = vmatpush.msra.mxu0 %v1465
      %v1467 = vand.u32 %v290, 4294901760
      %1468 = vmatpush.msra.mxu0 %v1467
      %v1469 = vand.u32 %v288, 4294901760
      %1470 = vmatpush.msra.mxu0 %v1469
      %v1471 = vand.u32 %v1065, 4294901760
      %v1472 = vsub.f32 %v1065, %v1471
      %v1473 = vand.u32 %v1472, 4294901760
      %v1474 = vsub.f32 %v1472, %v1473
      %v1475 = vand.u32 %v1474, 4294901760
      %1476 = vmatmul.f32.gmra.mxu0 %v1475
      %v1477 = vpop.f32.mrf.mxu0
      %v1478 = vadd.f32 0.0, %v1477
      %v1479 = vand.u32 %v1066, 4294901760
      %v1480 = vsub.f32 %v1066, %v1479
      %v1481 = vand.u32 %v1480, 4294901760
      %v1482 = vsub.f32 %v1480, %v1481
      %v1483 = vand.u32 %v1482, 4294901760
      %1484 = vmatmul.f32.gmra.mxu0 %v1483
      %v1485 = vpop.f32.mrf.mxu0
      %v1486 = vadd.f32 0.0, %v1485
      %1487 = vdwg.mxu0
      %v1488 = vand.u32 %v318, 4294901760
      %v1489 = vsub.f32 %v318, %v1488
      %v1490 = vand.u32 %v1489, 4294901760
      %v1491 = vsub.f32 %v1489, %v1490
      %v1492 = vand.u32 %v1491, 4294901760
      %1493 = vmatpush.msra.mxu0 %v1492
      %v1494 = vand.u32 %v316, 4294901760
      %v1495 = vsub.f32 %v316, %v1494
      %v1496 = vand.u32 %v1495, 4294901760
      %v1497 = vsub.f32 %v1495, %v1496
      %v1498 = vand.u32 %v1497, 4294901760
      %1499 = vmatpush.msra.mxu0 %v1498
      %v1500 = vand.u32 %v314, 4294901760
      %v1501 = vsub.f32 %v314, %v1500
      %v1502 = vand.u32 %v1501, 4294901760
      %v1503 = vsub.f32 %v1501, %v1502
      %v1504 = vand.u32 %v1503, 4294901760
      %1505 = vmatpush.msra.mxu0 %v1504
      %v1506 = vand.u32 %v312, 4294901760
      %v1507 = vsub.f32 %v312, %v1506
      %v1508 = vand.u32 %v1507, 4294901760
      %v1509 = vsub.f32 %v1507, %v1508
      %v1510 = vand.u32 %v1509, 4294901760
      %1511 = vmatpush.msra.mxu0 %v1510
      %v1512 = vand.u32 %v310, 4294901760
      %v1513 = vsub.f32 %v310, %v1512
      %v1514 = vand.u32 %v1513, 4294901760
      %v1515 = vsub.f32 %v1513, %v1514
      %v1516 = vand.u32 %v1515, 4294901760
      %1517 = vmatpush.msra.mxu0 %v1516
      %v1518 = vand.u32 %v308, 4294901760
      %v1519 = vsub.f32 %v308, %v1518
      %v1520 = vand.u32 %v1519, 4294901760
      %v1521 = vsub.f32 %v1519, %v1520
      %v1522 = vand.u32 %v1521, 4294901760
      %1523 = vmatpush.msra.mxu0 %v1522
      %v1524 = vand.u32 %v306, 4294901760
      %v1525 = vsub.f32 %v306, %v1524
      %v1526 = vand.u32 %v1525, 4294901760
      %v1527 = vsub.f32 %v1525, %v1526
      %v1528 = vand.u32 %v1527, 4294901760
      %1529 = vmatpush.msra.mxu0 %v1528
      %v1530 = vand.u32 %v304, 4294901760
      %v1531 = vsub.f32 %v304, %v1530
      %v1532 = vand.u32 %v1531, 4294901760
      %v1533 = vsub.f32 %v1531, %v1532
      %v1534 = vand.u32 %v1533, 4294901760
      %1535 = vmatpush.msra.mxu0 %v1534
      %v1536 = vand.u32 %v302, 4294901760
      %v1537 = vsub.f32 %v302, %v1536
      %v1538 = vand.u32 %v1537, 4294901760
      %v1539 = vsub.f32 %v1537, %v1538
      %v1540 = vand.u32 %v1539, 4294901760
      %1541 = vmatpush.msra.mxu0 %v1540
      %v1542 = vand.u32 %v300, 4294901760
      %v1543 = vsub.f32 %v300, %v1542
      %v1544 = vand.u32 %v1543, 4294901760
      %v1545 = vsub.f32 %v1543, %v1544
      %v1546 = vand.u32 %v1545, 4294901760
      %1547 = vmatpush.msra.mxu0 %v1546
      %v1548 = vand.u32 %v298, 4294901760
      %v1549 = vsub.f32 %v298, %v1548
      %v1550 = vand.u32 %v1549, 4294901760
      %v1551 = vsub.f32 %v1549, %v1550
      %v1552 = vand.u32 %v1551, 4294901760
      %1553 = vmatpush.msra.mxu0 %v1552
      %v1554 = vand.u32 %v296, 4294901760
      %v1555 = vsub.f32 %v296, %v1554
      %v1556 = vand.u32 %v1555, 4294901760
      %v1557 = vsub.f32 %v1555, %v1556
      %v1558 = vand.u32 %v1557, 4294901760
      %1559 = vmatpush.msra.mxu0 %v1558
      %v1560 = vand.u32 %v294, 4294901760
      %v1561 = vsub.f32 %v294, %v1560
      %v1562 = vand.u32 %v1561, 4294901760
      %v1563 = vsub.f32 %v1561, %v1562
      %v1564 = vand.u32 %v1563, 4294901760
      %1565 = vmatpush.msra.mxu0 %v1564
      %v1566 = vand.u32 %v292, 4294901760
      %v1567 = vsub.f32 %v292, %v1566
      %v1568 = vand.u32 %v1567, 4294901760
      %v1569 = vsub.f32 %v1567, %v1568
      %v1570 = vand.u32 %v1569, 4294901760
      %1571 = vmatpush.msra.mxu0 %v1570
      %v1572 = vand.u32 %v290, 4294901760
      %v1573 = vsub.f32 %v290, %v1572
      %v1574 = vand.u32 %v1573, 4294901760
      %v1575 = vsub.f32 %v1573, %v1574
      %v1576 = vand.u32 %v1575, 4294901760
      %1577 = vmatpush.msra.mxu0 %v1576
      %v1578 = vand.u32 %v288, 4294901760
      %v1579 = vsub.f32 %v288, %v1578
      %v1580 = vand.u32 %v1579, 4294901760
      %v1581 = vsub.f32 %v1579, %v1580
      %v1582 = vand.u32 %v1581, 4294901760
      %1583 = vmatpush.msra.mxu0 %v1582
      %v1584 = vand.u32 %v1065, 4294901760
      %1585 = vmatmul.f32.gmra.mxu0 %v1584
      %v1586 = vpop.f32.mrf.mxu0
      %v1587 = vadd.f32 %v1478, %v1586
      %v1588 = vand.u32 %v1066, 4294901760
      %1589 = vmatmul.f32.gmra.mxu0 %v1588
      %v1590 = vpop.f32.mrf.mxu0
      %v1591 = vadd.f32 %v1486, %v1590
      %1592 = vdwg.mxu0
      %v1593 = vand.u32 %v318, 4294901760
      %v1594 = vsub.f32 %v318, %v1593
      %1595 = vmatpush.msra.mxu0 %v1594
      %v1596 = vand.u32 %v316, 4294901760
      %v1597 = vsub.f32 %v316, %v1596
      %1598 = vmatpush.msra.mxu0 %v1597
      %v1599 = vand.u32 %v314, 4294901760
      %v1600 = vsub.f32 %v314, %v1599
      %1601 = vmatpush.msra.mxu0 %v1600
      %v1602 = vand.u32 %v312, 4294901760
      %v1603 = vsub.f32 %v312, %v1602
      %1604 = vmatpush.msra.mxu0 %v1603
      %v1605 = vand.u32 %v310, 4294901760
      %v1606 = vsub.f32 %v310, %v1605
      %1607 = vmatpush.msra.mxu0 %v1606
      %v1608 = vand.u32 %v308, 4294901760
      %v1609 = vsub.f32 %v308, %v1608
      %1610 = vmatpush.msra.mxu0 %v1609
      %v1611 = vand.u32 %v306, 4294901760
      %v1612 = vsub.f32 %v306, %v1611
      %1613 = vmatpush.msra.mxu0 %v1612
      %v1614 = vand.u32 %v304, 4294901760
      %v1615 = vsub.f32 %v304, %v1614
      %1616 = vmatpush.msra.mxu0 %v1615
      %v1617 = vand.u32 %v302, 4294901760
      %v1618 = vsub.f32 %v302, %v1617
      %1619 = vmatpush.msra.mxu0 %v1618
      %v1620 = vand.u32 %v300, 4294901760
      %v1621 = vsub.f32 %v300, %v1620
      %1622 = vmatpush.msra.mxu0 %v1621
      %v1623 = vand.u32 %v298, 4294901760
      %v1624 = vsub.f32 %v298, %v1623
      %1625 = vmatpush.msra.mxu0 %v1624
      %v1626 = vand.u32 %v296, 4294901760
      %v1627 = vsub.f32 %v296, %v1626
      %1628 = vmatpush.msra.mxu0 %v1627
      %v1629 = vand.u32 %v294, 4294901760
      %v1630 = vsub.f32 %v294, %v1629
      %1631 = vmatpush.msra.mxu0 %v1630
      %v1632 = vand.u32 %v292, 4294901760
      %v1633 = vsub.f32 %v292, %v1632
      %1634 = vmatpush.msra.mxu0 %v1633
      %v1635 = vand.u32 %v290, 4294901760
      %v1636 = vsub.f32 %v290, %v1635
      %1637 = vmatpush.msra.mxu0 %v1636
      %v1638 = vand.u32 %v288, 4294901760
      %v1639 = vsub.f32 %v288, %v1638
      %1640 = vmatpush.msra.mxu0 %v1639
      %v1641 = vand.u32 %v1065, 4294901760
      %v1642 = vsub.f32 %v1065, %v1641
      %1643 = vmatmul.f32.gmra.mxu0 %v1642
      %v1644 = vpop.f32.mrf.mxu0
      %v1645 = vadd.f32 %v1587, %v1644
      %v1646 = vand.u32 %v1066, 4294901760
      %v1647 = vsub.f32 %v1066, %v1646
      %1648 = vmatmul.f32.gmra.mxu0 %v1647
      %v1649 = vpop.f32.mrf.mxu0
      %v1650 = vadd.f32 %v1591, %v1649
      %1651 = vdwg.mxu0
      %v1652 = vand.u32 %v318, 4294901760
      %1653 = vmatpush.msra.mxu0 %v1652
      %v1654 = vand.u32 %v316, 4294901760
      %1655 = vmatpush.msra.mxu0 %v1654
      %v1656 = vand.u32 %v314, 4294901760
      %1657 = vmatpush.msra.mxu0 %v1656
      %v1658 = vand.u32 %v312, 4294901760
      %1659 = vmatpush.msra.mxu0 %v1658
      %v1660 = vand.u32 %v310, 4294901760
      %1661 = vmatpush.msra.mxu0 %v1660
      %v1662 = vand.u32 %v308, 4294901760
      %1663 = vmatpush.msra.mxu0 %v1662
      %v1664 = vand.u32 %v306, 4294901760
      %1665 = vmatpush.msra.mxu0 %v1664
      %v1666 = vand.u32 %v304, 4294901760
      %1667 = vmatpush.msra.mxu0 %v1666
      %v1668 = vand.u32 %v302, 4294901760
      %1669 = vmatpush.msra.mxu0 %v1668
      %v1670 = vand.u32 %v300, 4294901760
      %1671 = vmatpush.msra.mxu0 %v1670
      %v1672 = vand.u32 %v298, 4294901760
      %1673 = vmatpush.msra.mxu0 %v1672
      %v1674 = vand.u32 %v296, 4294901760
      %1675 = vmatpush.msra.mxu0 %v1674
      %v1676 = vand.u32 %v294, 4294901760
      %1677 = vmatpush.msra.mxu0 %v1676
      %v1678 = vand.u32 %v292, 4294901760
      %1679 = vmatpush.msra.mxu0 %v1678
      %v1680 = vand.u32 %v290, 4294901760
      %1681 = vmatpush.msra.mxu0 %v1680
      %v1682 = vand.u32 %v288, 4294901760
      %1683 = vmatpush.msra.mxu0 %v1682
      %v1684 = vand.u32 %v1065, 4294901760
      %v1685 = vsub.f32 %v1065, %v1684
      %v1686 = vand.u32 %v1685, 4294901760
      %1687 = vmatmul.f32.gmra.mxu0 %v1686
      %v1688 = vpop.f32.mrf.mxu0
      %v1689 = vadd.f32 %v1645, %v1688
      %v1690 = vand.u32 %v1066, 4294901760
      %v1691 = vsub.f32 %v1066, %v1690
      %v1692 = vand.u32 %v1691, 4294901760
      %1693 = vmatmul.f32.gmra.mxu0 %v1692
      %v1694 = vpop.f32.mrf.mxu0
      %v1695 = vadd.f32 %v1650, %v1694
      %1696 = vdwg.mxu0
      %v1697 = vand.u32 %v318, 4294901760
      %v1698 = vsub.f32 %v318, %v1697
      %v1699 = vand.u32 %v1698, 4294901760
      %1700 = vmatpush.msra.mxu0 %v1699
      %v1701 = vand.u32 %v316, 4294901760
      %v1702 = vsub.f32 %v316, %v1701
      %v1703 = vand.u32 %v1702, 4294901760
      %1704 = vmatpush.msra.mxu0 %v1703
      %v1705 = vand.u32 %v314, 4294901760
      %v1706 = vsub.f32 %v314, %v1705
      %v1707 = vand.u32 %v1706, 4294901760
      %1708 = vmatpush.msra.mxu0 %v1707
      %v1709 = vand.u32 %v312, 4294901760
      %v1710 = vsub.f32 %v312, %v1709
      %v1711 = vand.u32 %v1710, 4294901760
      %1712 = vmatpush.msra.mxu0 %v1711
      %v1713 = vand.u32 %v310, 4294901760
      %v1714 = vsub.f32 %v310, %v1713
      %v1715 = vand.u32 %v1714, 4294901760
      %1716 = vmatpush.msra.mxu0 %v1715
      %v1717 = vand.u32 %v308, 4294901760
      %v1718 = vsub.f32 %v308, %v1717
      %v1719 = vand.u32 %v1718, 4294901760
      %1720 = vmatpush.msra.mxu0 %v1719
      %v1721 = vand.u32 %v306, 4294901760
      %v1722 = vsub.f32 %v306, %v1721
      %v1723 = vand.u32 %v1722, 4294901760
      %1724 = vmatpush.msra.mxu0 %v1723
      %v1725 = vand.u32 %v304, 4294901760
      %v1726 = vsub.f32 %v304, %v1725
      %v1727 = vand.u32 %v1726, 4294901760
      %1728 = vmatpush.msra.mxu0 %v1727
      %v1729 = vand.u32 %v302, 4294901760
      %v1730 = vsub.f32 %v302, %v1729
      %v1731 = vand.u32 %v1730, 4294901760
      %1732 = vmatpush.msra.mxu0 %v1731
      %v1733 = vand.u32 %v300, 4294901760
      %v1734 = vsub.f32 %v300, %v1733
      %v1735 = vand.u32 %v1734, 4294901760
      %1736 = vmatpush.msra.mxu0 %v1735
      %v1737 = vand.u32 %v298, 4294901760
      %v1738 = vsub.f32 %v298, %v1737
      %v1739 = vand.u32 %v1738, 4294901760
      %1740 = vmatpush.msra.mxu0 %v1739
      %v1741 = vand.u32 %v296, 4294901760
      %v1742 = vsub.f32 %v296, %v1741
      %v1743 = vand.u32 %v1742, 4294901760
      %1744 = vmatpush.msra.mxu0 %v1743
      %v1745 = vand.u32 %v294, 4294901760
      %v1746 = vsub.f32 %v294, %v1745
      %v1747 = vand.u32 %v1746, 4294901760
      %1748 = vmatpush.msra.mxu0 %v1747
      %v1749 = vand.u32 %v292, 4294901760
      %v1750 = vsub.f32 %v292, %v1749
      %v1751 = vand.u32 %v1750, 4294901760
      %1752 = vmatpush.msra.mxu0 %v1751
      %v1753 = vand.u32 %v290, 4294901760
      %v1754 = vsub.f32 %v290, %v1753
      %v1755 = vand.u32 %v1754, 4294901760
      %1756 = vmatpush.msra.mxu0 %v1755
      %v1757 = vand.u32 %v288, 4294901760
      %v1758 = vsub.f32 %v288, %v1757
      %v1759 = vand.u32 %v1758, 4294901760
      %1760 = vmatpush.msra.mxu0 %v1759
      %v1761 = vand.u32 %v1065, 4294901760
      %1762 = vmatmul.f32.gmra.mxu0 %v1761
      %v1763 = vpop.f32.mrf.mxu0
      %v1764 = vadd.f32 %v1689, %v1763
      %v1765 = vand.u32 %v1066, 4294901760
      %1766 = vmatmul.f32.gmra.mxu0 %v1765
      %v1767 = vpop.f32.mrf.mxu0
      %v1768 = vadd.f32 %v1695, %v1767
      %1769 = vdwg.mxu0
      %v1770 = vand.u32 %v318, 4294901760
      %1771 = vmatpush.msra.mxu0 %v1770
      %v1772 = vand.u32 %v316, 4294901760
      %1773 = vmatpush.msra.mxu0 %v1772
      %v1774 = vand.u32 %v314, 4294901760
      %1775 = vmatpush.msra.mxu0 %v1774
      %v1776 = vand.u32 %v312, 4294901760
      %1777 = vmatpush.msra.mxu0 %v1776
      %v1778 = vand.u32 %v310, 4294901760
      %1779 = vmatpush.msra.mxu0 %v1778
      %v1780 = vand.u32 %v308, 4294901760
      %1781 = vmatpush.msra.mxu0 %v1780
      %v1782 = vand.u32 %v306, 4294901760
      %1783 = vmatpush.msra.mxu0 %v1782
      %v1784 = vand.u32 %v304, 4294901760
      %1785 = vmatpush.msra.mxu0 %v1784
      %v1786 = vand.u32 %v302, 4294901760
      %1787 = vmatpush.msra.mxu0 %v1786
      %v1788 = vand.u32 %v300, 4294901760
      %1789 = vmatpush.msra.mxu0 %v1788
      %v1790 = vand.u32 %v298, 4294901760
      %1791 = vmatpush.msra.mxu0 %v1790
      %v1792 = vand.u32 %v296, 4294901760
      %1793 = vmatpush.msra.mxu0 %v1792
      %v1794 = vand.u32 %v294, 4294901760
      %1795 = vmatpush.msra.mxu0 %v1794
      %v1796 = vand.u32 %v292, 4294901760
      %1797 = vmatpush.msra.mxu0 %v1796
      %v1798 = vand.u32 %v290, 4294901760
      %1799 = vmatpush.msra.mxu0 %v1798
      %v1800 = vand.u32 %v288, 4294901760
      %1801 = vmatpush.msra.mxu0 %v1800
      %v1802 = vand.u32 %v1065, 4294901760
      %1803 = vmatmul.f32.gmra.mxu0 %v1802
      %v1804 = vpop.f32.mrf.mxu0
      %v1805 = vadd.f32 %v1764, %v1804
      %v1806 = vand.u32 %v1066, 4294901760
      %1807 = vmatmul.f32.gmra.mxu0 %v1806
      %v1808 = vpop.f32.mrf.mxu0
      %v1809 = vadd.f32 %v1768, %v1808
      %1810 = vdwg.mxu0
      %v1811 = vmul.f32 %v687, %v687
      %v1812 = vmul.f32 %v1059, %v1059
      %v1813 = vmul.f32 %v691, %v691
      %v1814 = vmul.f32 %v1063, %v1063
      %v1815 = vmul.f32 %v1433, %v1433
      %v1816 = vmul.f32 %v1805, %v1805
      %v1817 = vmul.f32 %v1437, %v1437
      %v1818 = vmul.f32 %v1809, %v1809
      %v1819 = vadd.f32 %v1811, %v1812
      %v1820 = vadd.f32 %v1813, %v1814
      %v1821 = vadd.f32 %v1815, %v1816
      %v1822 = vadd.f32 %v1817, %v1818
      %v1823 = vrsqrt.pop %v1819
      %v1824 = vmul.f32 %v1823, %v1819
      %v1825 = vmul.f32 %v1824, %v1823
      %v1826 = vmul.f32 0.5, %v1825
      %v1827 = vsub.f32 1.5, %v1826
      %v1828 = vmul.f32 %v1823, %v1827
      %v1829 = vmul.f32 %v1819, %v1828
      %vm1830 = vcmp.eq.f32.partialorder %v1819, inf
      %v1831 = vsel %vm1830, %v1819, %v1829
      %vm1832 = vcmp.eq.f32.partialorder %v1819, 0.0
      %v1833 = vand.u32 %v1819, 2147483648
      %v1834 = vsel %vm1832, %v1833, %v1831
      %v1835 = vrsqrt.pop %v1820
      %v1836 = vmul.f32 %v1835, %v1820
      %v1837 = vmul.f32 %v1836, %v1835
      %v1838 = vmul.f32 0.5, %v1837
      %v1839 = vsub.f32 1.5, %v1838
      %v1840 = vmul.f32 %v1835, %v1839
      %v1841 = vmul.f32 %v1820, %v1840
      %vm1842 = vcmp.eq.f32.partialorder %v1820, inf
      %v1843 = vsel %vm1842, %v1820, %v1841
      %vm1844 = vcmp.eq.f32.partialorder %v1820, 0.0
      %v1845 = vand.u32 %v1820, 2147483648
      %v1846 = vsel %vm1844, %v1845, %v1843
      %v1847 = vrsqrt.pop %v1821
      %v1848 = vmul.f32 %v1847, %v1821
      %v1849 = vmul.f32 %v1848, %v1847
      %v1850 = vmul.f32 0.5, %v1849
      %v1851 = vsub.f32 1.5, %v1850
      %v1852 = vmul.f32 %v1847, %v1851
      %v1853 = vmul.f32 %v1821, %v1852
      %vm1854 = vcmp.eq.f32.partialorder %v1821, inf
      %v1855 = vsel %vm1854, %v1821, %v1853
      %vm1856 = vcmp.eq.f32.partialorder %v1821, 0.0
      %v1857 = vand.u32 %v1821, 2147483648
      %v1858 = vsel %vm1856, %v1857, %v1855
      %v1859 = vrsqrt.pop %v1822
      %v1860 = vmul.f32 %v1859, %v1822
      %v1861 = vmul.f32 %v1860, %v1859
      %v1862 = vmul.f32 0.5, %v1861
      %v1863 = vsub.f32 1.5, %v1862
      %v1864 = vmul.f32 %v1859, %v1863
      %v1865 = vmul.f32 %v1822, %v1864
      %vm1866 = vcmp.eq.f32.partialorder %v1822, inf
      %v1867 = vsel %vm1866, %v1822, %v1865
      %vm1868 = vcmp.eq.f32.partialorder %v1822, 0.0
      %v1869 = vand.u32 %v1822, 2147483648
      %v1870 = vsel %vm1868, %v1869, %v1867
      %v1871 = vsub.f32 %v1834, %v1858
      %v1872 = vsub.f32 %v1846, %v1870
      %v1873 = vand.u32 2147483647, %v1871
      %v1874 = vand.u32 2147483647, %v1872
      %v1875 = vmax.f32 %v1834, 1e-05
      %v1876 = vmax.f32 %v1846, 1e-05
      %v1877 = vmax.f32 %v1858, 1e-05
      %v1878 = vmax.f32 %v1870, 1e-05
      %v1879 = vlog2.pop %v1875
      %v1880 = vmul.f32 %v1879, 0.6931472
      %v1881 = vlog2.pop %v1876
      %v1882 = vmul.f32 %v1881, 0.6931472
      %v1883 = vmul.f32 %v1880, 0.4342945
      %v1884 = vmul.f32 %v1882, 0.4342945
      %v1885 = vlog2.pop %v1877
      %v1886 = vmul.f32 %v1885, 0.6931472
      %v1887 = vlog2.pop %v1878
      %v1888 = vmul.f32 %v1887, 0.6931472
      %v1889 = vmul.f32 %v1886, 0.4342945
      %v1890 = vmul.f32 %v1888, 0.4342945
      %v1891 = vsub.f32 %v1883, %v1889
      %v1892 = vsub.f32 %v1884, %v1890
      %v1893 = vand.u32 2147483647, %v1891
      %v1894 = vand.u32 2147483647, %v1892
      %v1895 = vmul.f32 %v1893, 2.0
      %v1896 = vmul.f32 %v1894, 2.0
      %v1897 = vadd.f32 %v1873, %v1874
      %1898 = vst [vmem:[%s279] sm:$0xff] %v1897
      %v1899 = vadd.f32 %v1895, %v1896
      %1900 = vst [vmem:[%s286] sm:$0xff] %v1899
      %p1901 = scmp.lt.s32.totalorder %s20, 1
      %s1902 = scalar_select %p1901, %s20, 1
      %p1903 = scmp.lt.s32.totalorder %s21, 0
      %s1904 = scalar_select %p1903, %s21, 0
      %s1905 = sadd.s32 %s1904, %s1902
      %s1906 = smul.addr %s1905, 8
      %s1907 = scalar_lea.vmem %s3, %s1906
      %p1908 = scmp.lt.s32.totalorder %s20, 1
      %s1909 = scalar_select %p1908, %s20, 1
      %p1910 = scmp.lt.s32.totalorder %s21, 0
      %s1911 = scalar_select %p1910, %s21, 0
      %s1912 = sadd.s32 %s1911, %s1909
      %s1913 = smul.addr %s1912, 8
      %s1914 = scalar_lea.vmem %s4, %s1913
      // Predicated region
      $region33: #{multi_scale_stft_loss.2} parent=31 // pred_check
        %p1915 = pneg %p125
      $region34: #{multi_scale_stft_loss.2} parent=31 // pred_check_branch
        %1917 = sbr.rel (%p1915) target = $region36
      $region35: #{multi_scale_stft_loss.2} parent=31 // pred_region
        _
      $region36: #{multi_scale_stft_loss.2} parent=31 // pred_fallthru
        _
      // Predicated region
      $region37: #{multi_scale_stft_loss.2} parent=31 // pred_check
        %p1918 = pneg %p153
      $region38: #{multi_scale_stft_loss.2} parent=31 // pred_check_branch
        %1920 = sbr.rel (%p1918) target = $region40
      $region39: #{multi_scale_stft_loss.2} parent=31 // pred_region
        _
      $region40: #{multi_scale_stft_loss.2} parent=31 // pred_fallthru
        _
    $region32: #{multi_scale_stft_loss.2} parent=5 // pred_fallthru
      _
    %p1921 = scmp.le.s32.totalorder 2, %s11
    // Predicated region
    $region41: #{multi_scale_stft_loss.2} parent=5 // pred_check
      %p1922 = pneg %p1921
    $region42: #{multi_scale_stft_loss.2} parent=5 // pred_check_branch
      %1924 = sbr.rel (%p1922) target = $region44
    $region43: #{multi_scale_stft_loss.2} parent=5 // pred_region
      %s1925 = ssub.s32 %s11, 2
      // Predicated region
      $region45: #{multi_scale_stft_loss.2} parent=43 // pred_check
        %p1926 = pneg %p131
      $region46: #{multi_scale_stft_loss.2} parent=43 // pred_check_branch
        %1928 = sbr.rel (%p1926) target = $region48
      $region47: #{multi_scale_stft_loss.2} parent=43 // pred_region
        %p1929 = scmp.lt.s32.totalorder %s22, 1
        %s1930 = scalar_select %p1929, %s22, 1
        %p1931 = scmp.lt.s32.totalorder %s23, 0
        %s1932 = scalar_select %p1931, %s23, 0
        %s1933 = sadd.s32 %s1932, %s1930
        %s1934 = smul.addr %s1933, 8
        %s1935 = scalar_lea.vmem %s3, %s1934
      $region48: #{multi_scale_stft_loss.2} parent=43 // pred_fallthru
        _
      // Predicated region
      $region49: #{multi_scale_stft_loss.2} parent=43 // pred_check
        %p1936 = pneg %p159
      $region50: #{multi_scale_stft_loss.2} parent=43 // pred_check_branch
        %1938 = sbr.rel (%p1936) target = $region52
      $region51: #{multi_scale_stft_loss.2} parent=43 // pred_region
        %p1939 = scmp.lt.s32.totalorder %s22, 1
        %s1940 = scalar_select %p1939, %s22, 1
        %p1941 = scmp.lt.s32.totalorder %s23, 0
        %s1942 = scalar_select %p1941, %s23, 0
        %s1943 = sadd.s32 %s1942, %s1940
        %s1944 = smul.addr %s1943, 8
        %s1945 = scalar_lea.vmem %s4, %s1944
      $region52: #{multi_scale_stft_loss.2} parent=43 // pred_fallthru
        _
    $region44: #{multi_scale_stft_loss.2} parent=5 // pred_fallthru
      _
  $region6: #{multi_scale_stft_loss.2} parent=0 // loop_footer
    %s15 = sadd.s32 1, %s11
  $region7: #{multi_scale_stft_loss.2} parent=0 // loop_footer_branch
    %10 = sbr.rel target = $region3
  $region8: #{multi_scale_stft_loss.2} parent=0 // loop_exit
    _

</llo_original>
